<compile_context>
chip_gen: v5e
topology: v5e:2x2
jax: 0.10.0
libtpu: 0.0.40
codegen_flags: <defaults>
</compile_context>

<pallas_src>
import functools

import jax
import jax.numpy as jnp
from jax.experimental import pallas as pl
from jax.experimental.pallas import tpu as pltpu


def _combined_kernel(
    x_ref,                            # (T*B, D)   time-major rows: row = t*B + b
    w_in_ref,                         # (D, 4H+Gh) fused [W_ih0 | W_gcn1] weight
    whh0_ref, b0_ref,                 # (H, 4H), (1, 4H)   layer-0 recurrent, folded bias
    wih1_ref, whh1_ref, b1_ref,       # (H, 4H), (H, 4H), (1, 4H)   layer 1
    wlf_ref, blf_ref,                 # (H, Ol), (1, Ol)   LSTM head fc
    bg1_ref,                          # (1, Gh)            GCN conv1 bias
    wg2_ref, bg2_ref,                 # (Gh, Go), (1, Go)  GCN conv2
    wf_l_ref, wf_g_ref, bf_ref,       # (Ol, Ol), (Go, Ol), (1, Ol)  final fc (split)
    out_ref,                          # (T*B, Ol)  time-major output slab
    *, B, T,
):
    H = whh0_ref.shape[0]
    G4 = 4 * H
    f32 = jnp.float32

    x = x_ref[...]                                                   # (T*B, D)

    # ---- Hoisted, time-parallel matmuls (single GEMMs over all T*B rows) ----
    # One fused GEMM covers LSTM layer-0 input projection AND GCN conv1.
    xg = jnp.dot(x, w_in_ref[...], preferred_element_type=f32)      # (T*B, 4H+Gh)
    xp0 = xg[:, :G4] + b0_ref[...]                                   # LSTM-0 gates (pre-recurrent)
    g_hid = jnp.maximum(xg[:, G4:] + bg1_ref[...], 0.0)             # GCN conv1 + relu
    gnn_out = (jnp.dot(g_hid, wg2_ref[...], preferred_element_type=f32)
               + bg2_ref[...])                                       # (T*B, Go)

    # Broadcast the layer-1 gate bias once (not per iteration).
    b1b = jnp.broadcast_to(b1_ref[...], (B, G4))

    # ---- Sequential LSTM recurrence, fully unrolled (T small & static) ----
    def cell(gates, c):
        # PyTorch LSTM gate order: i, f, g, o
        i_g = jax.nn.sigmoid(gates[:, 0 * H:1 * H])
        f_g = jax.nn.sigmoid(gates[:, 1 * H:2 * H])
        g_g = jnp.tanh(gates[:, 2 * H:3 * H])
        o_g = jax.nn.sigmoid(gates[:, 3 * H:4 * H])
        c_new = f_g * c + i_g * g_g
        return o_g * jnp.tanh(c_new), c_new

    zeros_bh = jnp.zeros((B, H), f32)
    h1, c1 = zeros_bh, zeros_bh
    h2, c2 = zeros_bh, zeros_bh
    h2_steps = []
    for t in range(T):                 # only h @ W_hh matmuls stay inside the loop
        gates0 = xp0[t * B:(t + 1) * B, :] + jnp.dot(
            h1, whh0_ref[...], preferred_element_type=f32)
        h1, c1 = cell(gates0, c1)
        gates1 = (jnp.dot(h1, wih1_ref[...], preferred_element_type=f32)
                  + jnp.dot(h2, whh1_ref[...], preferred_element_type=f32)
                  + b1b)
        h2, c2 = cell(gates1, c2)
        h2_steps.append(h2)

    h2_all = jnp.concatenate(h2_steps, axis=0)                       # (T*B, H)

    # ---- Hoisted post-recurrence matmuls ----
    lstm_head = (jnp.dot(h2_all, wlf_ref[...], preferred_element_type=f32)
                 + blf_ref[...])                                     # (T*B, Ol)
    # Final fc over concat([lstm_out, gnn_out], -1) as a split matmul
    # (avoids any lane-dim concatenate inside the kernel).
    out = (jnp.dot(lstm_head, wf_l_ref[...], preferred_element_type=f32)
           + jnp.dot(gnn_out, wf_g_ref[...], preferred_element_type=f32)
           + bf_ref[...])                                            # (T*B, Ol)

    out_ref[...] = out.astype(out_ref.dtype)


def combined_model_forward(x_btd, params):
    """x_btd: (B, T, D) float32, batch-first (like the PyTorch module)."""
    B, T, D = x_btd.shape
    Ol = params["wlf_T"].shape[1]

    # Wrapper-side layout plumbing (tiny): time-major flattening so per-step
    # gate slices in the kernel are plain contiguous sublane slices.
    x_tm = jnp.transpose(x_btd, (1, 0, 2)).reshape(T * B, D)
    # Fuse the two time-parallel input projections into one GEMM operand.
    w_in = jnp.concatenate([params["wih0_T"], params["wg1_T"]], axis=1)

    weight_args = [
        w_in, params["whh0_T"], params["b0"],
        params["wih1_T"], params["whh1_T"], params["b1"],
        params["wlf_T"], params["blf"],
        params["bg1"], params["wg2_T"], params["bg2"],
        params["wf_lstm_T"], params["wf_gnn_T"], params["bf"],
    ]

    vmem = pl.BlockSpec(memory_space=pltpu.MemorySpace.VMEM)
    out_flat = pl.pallas_call(
        functools.partial(_combined_kernel, B=B, T=T),
        out_shape=jax.ShapeDtypeStruct((T * B, Ol), jnp.float32),
        in_specs=[vmem] * (1 + len(weight_args)),
        out_specs=vmem,
    )(x_tm, *weight_args)

    # Time-major slab -> (B, T, Ol); row-major reshape + tiny XLA transpose.
    return out_flat.reshape(T, B, Ol).transpose(1, 0, 2)


def combined_model_reference(x, params):
    """Pure-JAX reference with identical semantics (correctness check)."""
    B, T, _ = x.shape
    H = params["whh0_T"].shape[0]

    def lstm_layer(seq, wih_T, whh_T, b):
        h = jnp.zeros((B, H), jnp.float32)
        c = jnp.zeros((B, H), jnp.float32)
        outs = []
        for t in range(T):
            gates = seq[:, t, :] @ wih_T + h @ whh_T + b
            i_g = jax.nn.sigmoid(gates[:, 0 * H:1 * H])
            f_g = jax.nn.sigmoid(gates[:, 1 * H:2 * H])
            g_g = jnp.tanh(gates[:, 2 * H:3 * H])
            o_g = jax.nn.sigmoid(gates[:, 3 * H:4 * H])
            c = f_g * c + i_g * g_g
            h = o_g * jnp.tanh(c)
            outs.append(h)
        return jnp.stack(outs, axis=1)                       # (B, T, H)

    h1_seq = lstm_layer(x, params["wih0_T"], params["whh0_T"], params["b0"])
    h2_seq = lstm_layer(h1_seq, params["wih1_T"], params["whh1_T"], params["b1"])
    lstm_out = h2_seq @ params["wlf_T"] + params["blf"]
    g_hid = jax.nn.relu(x @ params["wg1_T"] + params["bg1"])
    gnn_out = g_hid @ params["wg2_T"] + params["bg2"]
    return (lstm_out @ params["wf_lstm_T"] + gnn_out @ params["wf_gnn_T"]
            + params["bf"])


def init_params(key, lstm_in, lstm_hidden, lstm_out, gnn_in, gnn_hidden, gnn_out):
    """Deterministic synthetic init (uniform +-1/sqrt(fan), like PyTorch defaults)."""
    keys = jax.random.split(key, 20)   # 17 draws needed; extra keys are unused
    ki = iter(keys)

    def u(k, shape, fan):
        bound = 1.0 / jnp.sqrt(jnp.float32(fan))
        return jax.random.uniform(k, shape, jnp.float32, -bound, bound)

    H4 = 4 * lstm_hidden
    params = {
        # LSTM layer 0 (weights stored transposed: (in, 4H)); b = b_ih + b_hh folded
        "wih0_T": u(next(ki), (lstm_in, H4), lstm_hidden),
        "whh0_T": u(next(ki), (lstm_hidden, H4), lstm_hidden),
        "b0": u(next(ki), (1, H4), lstm_hidden) + u(next(ki), (1, H4), lstm_hidden),
        # LSTM layer 1
        "wih1_T": u(next(ki), (lstm_hidden, H4), lstm_hidden),
        "whh1_T": u(next(ki), (lstm_hidden, H4), lstm_hidden),
        "b1": u(next(ki), (1, H4), lstm_hidden) + u(next(ki), (1, H4), lstm_hidden),
        # LSTM head fc
        "wlf_T": u(next(ki), (lstm_hidden, lstm_out), lstm_hidden),
        "blf": u(next(ki), (1, lstm_out), lstm_hidden),
        # GCN conv1 / conv2 (empty edge_index -> pure linear)
        "wg1_T": u(next(ki), (gnn_in, gnn_hidden), gnn_in),
        "bg1": u(next(ki), (1, gnn_hidden), gnn_in),
        "wg2_T": u(next(ki), (gnn_hidden, gnn_out), gnn_hidden),
        "bg2": u(next(ki), (1, gnn_out), gnn_hidden),
        # Final fc over concat([lstm_out, gnn_out]) -> split into two blocks
        "wf_lstm_T": u(next(ki), (lstm_out, lstm_out), lstm_out + gnn_out),
        "wf_gnn_T": u(next(ki), (gnn_out, lstm_out), lstm_out + gnn_out),
        "bf": u(next(ki), (1, lstm_out), lstm_out + gnn_out),
    }
    return params


if __name__ == "__main__":
    # Shapes consistent with the forward:
    #   x: (batch=2, seq=8, feat=16); lstm hidden 32, lstm_output 16;
    #   gnn_input_dim == lstm_input_size == 16, gnn_hidden 32, gnn_output 16.
    B, T, D = 2, 8, 16
    LSTM_H, LSTM_O = 32, 16
    GNN_H, GNN_O = 32, 16

    key = jax.random.PRNGKey(0)
    kx, kp = jax.random.split(key)
    x = jax.random.normal(kx, (B, T, D), dtype=jnp.float32)
    params = init_params(kp, D, LSTM_H, LSTM_O, D, GNN_H, GNN_O)

    fwd = jax.jit(combined_model_forward)
    out = jax.block_until_ready(fwd(x, params))

    assert out.shape == (B, T, LSTM_O), out.shape
    assert bool(jnp.all(jnp.isfinite(out)))

    # Correctness vs pure-JAX reference (loose tol: MXU f32 pass differences).
    ref = combined_model_reference(x, params)
    max_err = float(jnp.max(jnp.abs(out - ref)))
    assert jnp.allclose(out, ref, rtol=1e-2, atol=1e-2), max_err

    print("KERNEL_OK")
</pallas_src>

<mosaic_0001>
module attributes {stable_mosaic.version = 11 : i64} {
  func.func @_combined_kernel(%arg0: memref<16x16xf32, #tpu.memory_space<vmem>>, %arg1: memref<16x160xf32, #tpu.memory_space<vmem>>, %arg2: memref<32x128xf32, #tpu.memory_space<vmem>>, %arg3: memref<1x128xf32, #tpu.memory_space<vmem>>, %arg4: memref<32x128xf32, #tpu.memory_space<vmem>>, %arg5: memref<32x128xf32, #tpu.memory_space<vmem>>, %arg6: memref<1x128xf32, #tpu.memory_space<vmem>>, %arg7: memref<32x16xf32, #tpu.memory_space<vmem>>, %arg8: memref<1x16xf32, #tpu.memory_space<vmem>>, %arg9: memref<1x32xf32, #tpu.memory_space<vmem>>, %arg10: memref<32x16xf32, #tpu.memory_space<vmem>>, %arg11: memref<1x16xf32, #tpu.memory_space<vmem>>, %arg12: memref<16x16xf32, #tpu.memory_space<vmem>>, %arg13: memref<16x16xf32, #tpu.memory_space<vmem>>, %arg14: memref<1x16xf32, #tpu.memory_space<vmem>>, %arg15: memref<16x16xf32, #tpu.memory_space<vmem>>) attributes {dimension_semantics = [], scalar_prefetch = 0 : i64, scratch_operands = 0 : i64, tpu.core_type = #tpu.core_type<tc>} {
    %c0 = arith.constant 0 : index
    %c0_0 = arith.constant 0 : index
    %0 = vector.load %arg0[%c0, %c0_0] : memref<16x16xf32, #tpu.memory_space<vmem>>, vector<16x16xf32>
    %c0_1 = arith.constant 0 : index
    %c0_2 = arith.constant 0 : index
    %1 = vector.load %arg1[%c0_1, %c0_2] : memref<16x160xf32, #tpu.memory_space<vmem>>, vector<16x160xf32>
    %cst = arith.constant dense<0.000000e+00> : vector<16x160xf32>
    %2 = tpu.matmul %0, %1, %cst {dimension_numbers = #tpu.dot_dimension_numbers<[1], [0], [0], [1], [0, 0, 1, 1], [], []>} : vector<16x16xf32>, vector<16x160xf32>, vector<16x160xf32> -> vector<16x160xf32>
    %3 = vector.extract_strided_slice %2 {offsets = [0, 0], sizes = [16, 128], strides = [1, 1]} : vector<16x160xf32> to vector<16x128xf32>
    %c0_3 = arith.constant 0 : index
    %c0_4 = arith.constant 0 : index
    %4 = vector.load %arg3[%c0_3, %c0_4] : memref<1x128xf32, #tpu.memory_space<vmem>>, vector<1x128xf32>
    %5 = vector.broadcast %4 : vector<1x128xf32> to vector<16x128xf32>
    %6 = arith.addf %3, %5 : vector<16x128xf32>
    %7 = vector.extract_strided_slice %2 {offsets = [0, 128], sizes = [16, 32], strides = [1, 1]} : vector<16x160xf32> to vector<16x32xf32>
    %c0_5 = arith.constant 0 : index
    %c0_6 = arith.constant 0 : index
    %8 = vector.load %arg9[%c0_5, %c0_6] : memref<1x32xf32, #tpu.memory_space<vmem>>, vector<1x32xf32>
    %9 = vector.broadcast %8 : vector<1x32xf32> to vector<16x32xf32>
    %10 = arith.addf %7, %9 : vector<16x32xf32>
    %cst_7 = arith.constant 0.000000e+00 : f32
    %11 = vector.broadcast %cst_7 : f32 to vector<16x32xf32>
    %12 = arith.maximumf %10, %11 : vector<16x32xf32>
    %c0_8 = arith.constant 0 : index
    %c0_9 = arith.constant 0 : index
    %13 = vector.load %arg10[%c0_8, %c0_9] : memref<32x16xf32, #tpu.memory_space<vmem>>, vector<32x16xf32>
    %cst_10 = arith.constant dense<0.000000e+00> : vector<16x16xf32>
    %14 = tpu.matmul %12, %13, %cst_10 {dimension_numbers = #tpu.dot_dimension_numbers<[1], [0], [0], [1], [0, 0, 1, 1], [], []>} : vector<16x32xf32>, vector<32x16xf32>, vector<16x16xf32> -> vector<16x16xf32>
    %c0_11 = arith.constant 0 : index
    %c0_12 = arith.constant 0 : index
    %15 = vector.load %arg11[%c0_11, %c0_12] : memref<1x16xf32, #tpu.memory_space<vmem>>, vector<1x16xf32>
    %16 = vector.broadcast %15 : vector<1x16xf32> to vector<16x16xf32>
    %17 = arith.addf %14, %16 : vector<16x16xf32>
    %c0_13 = arith.constant 0 : index
    %c0_14 = arith.constant 0 : index
    %18 = vector.load %arg6[%c0_13, %c0_14] : memref<1x128xf32, #tpu.memory_space<vmem>>, vector<1x128xf32>
    %19 = vector.shape_cast %18 : vector<1x128xf32> to vector<1x128xf32>
    %20 = vector.broadcast %19 : vector<1x128xf32> to vector<2x128xf32>
    %cst_15 = arith.constant 0.000000e+00 : f32
    %21 = vector.broadcast %cst_15 : f32 to vector<2x32xf32>
    %22 = vector.extract_strided_slice %6 {offsets = [0, 0], sizes = [2, 128], strides = [1, 1]} : vector<16x128xf32> to vector<2x128xf32>
    %c0_16 = arith.constant 0 : index
    %c0_17 = arith.constant 0 : index
    %23 = vector.load %arg2[%c0_16, %c0_17] : memref<32x128xf32, #tpu.memory_space<vmem>>, vector<32x128xf32>
    %cst_18 = arith.constant dense<0.000000e+00> : vector<2x128xf32>
    %24 = tpu.matmul %21, %23, %cst_18 {dimension_numbers = #tpu.dot_dimension_numbers<[1], [0], [0], [1], [0, 0, 1, 1], [], []>} : vector<2x32xf32>, vector<32x128xf32>, vector<2x128xf32> -> vector<2x128xf32>
    %25 = arith.addf %22, %24 : vector<2x128xf32>
    %26 = vector.extract_strided_slice %25 {offsets = [0, 0], sizes = [2, 32], strides = [1, 1]} : vector<2x128xf32> to vector<2x32xf32>
    %27 = arith.negf %26 : vector<2x32xf32>
    %28 = math.exp %27 : vector<2x32xf32>
    %cst_19 = arith.constant 1.000000e+00 : f32
    %29 = vector.broadcast %cst_19 : f32 to vector<2x32xf32>
    %30 = arith.addf %29, %28 : vector<2x32xf32>
    %31 = arith.divf %29, %30 : vector<2x32xf32>
    %32 = vector.extract_strided_slice %25 {offsets = [0, 32], sizes = [2, 32], strides = [1, 1]} : vector<2x128xf32> to vector<2x32xf32>
    %33 = arith.negf %32 : vector<2x32xf32>
    %34 = math.exp %33 : vector<2x32xf32>
    %cst_20 = arith.constant 1.000000e+00 : f32
    %35 = vector.broadcast %cst_20 : f32 to vector<2x32xf32>
    %36 = arith.addf %35, %34 : vector<2x32xf32>
    %37 = arith.divf %35, %36 : vector<2x32xf32>
    %38 = vector.extract_strided_slice %25 {offsets = [0, 64], sizes = [2, 32], strides = [1, 1]} : vector<2x128xf32> to vector<2x32xf32>
    %39 = math.tanh %38 : vector<2x32xf32>
    %40 = vector.extract_strided_slice %25 {offsets = [0, 96], sizes = [2, 32], strides = [1, 1]} : vector<2x128xf32> to vector<2x32xf32>
    %41 = arith.negf %40 : vector<2x32xf32>
    %42 = math.exp %41 : vector<2x32xf32>
    %cst_21 = arith.constant 1.000000e+00 : f32
    %43 = vector.broadcast %cst_21 : f32 to vector<2x32xf32>
    %44 = arith.addf %43, %42 : vector<2x32xf32>
    %45 = arith.divf %43, %44 : vector<2x32xf32>
    %46 = arith.mulf %37, %21 : vector<2x32xf32>
    %47 = arith.mulf %31, %39 : vector<2x32xf32>
    %48 = arith.addf %46, %47 : vector<2x32xf32>
    %49 = math.tanh %48 : vector<2x32xf32>
    %50 = arith.mulf %45, %49 : vector<2x32xf32>
    %c0_22 = arith.constant 0 : index
    %c0_23 = arith.constant 0 : index
    %51 = vector.load %arg4[%c0_22, %c0_23] : memref<32x128xf32, #tpu.memory_space<vmem>>, vector<32x128xf32>
    %cst_24 = arith.constant dense<0.000000e+00> : vector<2x128xf32>
    %52 = tpu.matmul %50, %51, %cst_24 {dimension_numbers = #tpu.dot_dimension_numbers<[1], [0], [0], [1], [0, 0, 1, 1], [], []>} : vector<2x32xf32>, vector<32x128xf32>, vector<2x128xf32> -> vector<2x128xf32>
    %c0_25 = arith.constant 0 : index
    %c0_26 = arith.constant 0 : index
    %53 = vector.load %arg5[%c0_25, %c0_26] : memref<32x128xf32, #tpu.memory_space<vmem>>, vector<32x128xf32>
    %cst_27 = arith.constant dense<0.000000e+00> : vector<2x128xf32>
    %54 = tpu.matmul %21, %53, %cst_27 {dimension_numbers = #tpu.dot_dimension_numbers<[1], [0], [0], [1], [0, 0, 1, 1], [], []>} : vector<2x32xf32>, vector<32x128xf32>, vector<2x128xf32> -> vector<2x128xf32>
    %55 = arith.addf %52, %54 : vector<2x128xf32>
    %56 = arith.addf %55, %20 : vector<2x128xf32>
    %57 = vector.extract_strided_slice %56 {offsets = [0, 0], sizes = [2, 32], strides = [1, 1]} : vector<2x128xf32> to vector<2x32xf32>
    %58 = arith.negf %57 : vector<2x32xf32>
    %59 = math.exp %58 : vector<2x32xf32>
    %cst_28 = arith.constant 1.000000e+00 : f32
    %60 = vector.broadcast %cst_28 : f32 to vector<2x32xf32>
    %61 = arith.addf %60, %59 : vector<2x32xf32>
    %62 = arith.divf %60, %61 : vector<2x32xf32>
    %63 = vector.extract_strided_slice %56 {offsets = [0, 32], sizes = [2, 32], strides = [1, 1]} : vector<2x128xf32> to vector<2x32xf32>
    %64 = arith.negf %63 : vector<2x32xf32>
    %65 = math.exp %64 : vector<2x32xf32>
    %cst_29 = arith.constant 1.000000e+00 : f32
    %66 = vector.broadcast %cst_29 : f32 to vector<2x32xf32>
    %67 = arith.addf %66, %65 : vector<2x32xf32>
    %68 = arith.divf %66, %67 : vector<2x32xf32>
    %69 = vector.extract_strided_slice %56 {offsets = [0, 64], sizes = [2, 32], strides = [1, 1]} : vector<2x128xf32> to vector<2x32xf32>
    %70 = math.tanh %69 : vector<2x32xf32>
    %71 = vector.extract_strided_slice %56 {offsets = [0, 96], sizes = [2, 32], strides = [1, 1]} : vector<2x128xf32> to vector<2x32xf32>
    %72 = arith.negf %71 : vector<2x32xf32>
    %73 = math.exp %72 : vector<2x32xf32>
    %cst_30 = arith.constant 1.000000e+00 : f32
    %74 = vector.broadcast %cst_30 : f32 to vector<2x32xf32>
    %75 = arith.addf %74, %73 : vector<2x32xf32>
    %76 = arith.divf %74, %75 : vector<2x32xf32>
    %77 = arith.mulf %68, %21 : vector<2x32xf32>
    %78 = arith.mulf %62, %70 : vector<2x32xf32>
    %79 = arith.addf %77, %78 : vector<2x32xf32>
    %80 = math.tanh %79 : vector<2x32xf32>
    %81 = arith.mulf %76, %80 : vector<2x32xf32>
    %82 = vector.extract_strided_slice %6 {offsets = [2, 0], sizes = [2, 128], strides = [1, 1]} : vector<16x128xf32> to vector<2x128xf32>
    %c0_31 = arith.constant 0 : index
    %c0_32 = arith.constant 0 : index
    %83 = vector.load %arg2[%c0_31, %c0_32] : memref<32x128xf32, #tpu.memory_space<vmem>>, vector<32x128xf32>
    %cst_33 = arith.constant dense<0.000000e+00> : vector<2x128xf32>
    %84 = tpu.matmul %50, %83, %cst_33 {dimension_numbers = #tpu.dot_dimension_numbers<[1], [0], [0], [1], [0, 0, 1, 1], [], []>} : vector<2x32xf32>, vector<32x128xf32>, vector<2x128xf32> -> vector<2x128xf32>
    %85 = arith.addf %82, %84 : vector<2x128xf32>
    %86 = vector.extract_strided_slice %85 {offsets = [0, 0], sizes = [2, 32], strides = [1, 1]} : vector<2x128xf32> to vector<2x32xf32>
    %87 = arith.negf %86 : vector<2x32xf32>
    %88 = math.exp %87 : vector<2x32xf32>
    %cst_34 = arith.constant 1.000000e+00 : f32
    %89 = vector.broadcast %cst_34 : f32 to vector<2x32xf32>
    %90 = arith.addf %89, %88 : vector<2x32xf32>
    %91 = arith.divf %89, %90 : vector<2x32xf32>
    %92 = vector.extract_strided_slice %85 {offsets = [0, 32], sizes = [2, 32], strides = [1, 1]} : vector<2x128xf32> to vector<2x32xf32>
    %93 = arith.negf %92 : vector<2x32xf32>
    %94 = math.exp %93 : vector<2x32xf32>
    %cst_35 = arith.constant 1.000000e+00 : f32
    %95 = vector.broadcast %cst_35 : f32 to vector<2x32xf32>
    %96 = arith.addf %95, %94 : vector<2x32xf32>
    %97 = arith.divf %95, %96 : vector<2x32xf32>
    %98 = vector.extract_strided_slice %85 {offsets = [0, 64], sizes = [2, 32], strides = [1, 1]} : vector<2x128xf32> to vector<2x32xf32>
    %99 = math.tanh %98 : vector<2x32xf32>
    %100 = vector.extract_strided_slice %85 {offsets = [0, 96], sizes = [2, 32], strides = [1, 1]} : vector<2x128xf32> to vector<2x32xf32>
    %101 = arith.negf %100 : vector<2x32xf32>
    %102 = math.exp %101 : vector<2x32xf32>
    %cst_36 = arith.constant 1.000000e+00 : f32
    %103 = vector.broadcast %cst_36 : f32 to vector<2x32xf32>
    %104 = arith.addf %103, %102 : vector<2x32xf32>
    %105 = arith.divf %103, %104 : vector<2x32xf32>
    %106 = arith.mulf %97, %48 : vector<2x32xf32>
    %107 = arith.mulf %91, %99 : vector<2x32xf32>
    %108 = arith.addf %106, %107 : vector<2x32xf32>
    %109 = math.tanh %108 : vector<2x32xf32>
    %110 = arith.mulf %105, %109 : vector<2x32xf32>
    %c0_37 = arith.constant 0 : index
    %c0_38 = arith.constant 0 : index
    %111 = vector.load %arg4[%c0_37, %c0_38] : memref<32x128xf32, #tpu.memory_space<vmem>>, vector<32x128xf32>
    %cst_39 = arith.constant dense<0.000000e+00> : vector<2x128xf32>
    %112 = tpu.matmul %110, %111, %cst_39 {dimension_numbers = #tpu.dot_dimension_numbers<[1], [0], [0], [1], [0, 0, 1, 1], [], []>} : vector<2x32xf32>, vector<32x128xf32>, vector<2x128xf32> -> vector<2x128xf32>
    %c0_40 = arith.constant 0 : index
    %c0_41 = arith.constant 0 : index
    %113 = vector.load %arg5[%c0_40, %c0_41] : memref<32x128xf32, #tpu.memory_space<vmem>>, vector<32x128xf32>
    %cst_42 = arith.constant dense<0.000000e+00> : vector<2x128xf32>
    %114 = tpu.matmul %81, %113, %cst_42 {dimension_numbers = #tpu.dot_dimension_numbers<[1], [0], [0], [1], [0, 0, 1, 1], [], []>} : vector<2x32xf32>, vector<32x128xf32>, vector<2x128xf32> -> vector<2x128xf32>
    %115 = arith.addf %112, %114 : vector<2x128xf32>
    %116 = arith.addf %115, %20 : vector<2x128xf32>
    %117 = vector.extract_strided_slice %116 {offsets = [0, 0], sizes = [2, 32], strides = [1, 1]} : vector<2x128xf32> to vector<2x32xf32>
    %118 = arith.negf %117 : vector<2x32xf32>
    %119 = math.exp %118 : vector<2x32xf32>
    %cst_43 = arith.constant 1.000000e+00 : f32
    %120 = vector.broadcast %cst_43 : f32 to vector<2x32xf32>
    %121 = arith.addf %120, %119 : vector<2x32xf32>
    %122 = arith.divf %120, %121 : vector<2x32xf32>
    %123 = vector.extract_strided_slice %116 {offsets = [0, 32], sizes = [2, 32], strides = [1, 1]} : vector<2x128xf32> to vector<2x32xf32>
    %124 = arith.negf %123 : vector<2x32xf32>
    %125 = math.exp %124 : vector<2x32xf32>
    %cst_44 = arith.constant 1.000000e+00 : f32
    %126 = vector.broadcast %cst_44 : f32 to vector<2x32xf32>
    %127 = arith.addf %126, %125 : vector<2x32xf32>
    %128 = arith.divf %126, %127 : vector<2x32xf32>
    %129 = vector.extract_strided_slice %116 {offsets = [0, 64], sizes = [2, 32], strides = [1, 1]} : vector<2x128xf32> to vector<2x32xf32>
    %130 = math.tanh %129 : vector<2x32xf32>
    %131 = vector.extract_strided_slice %116 {offsets = [0, 96], sizes = [2, 32], strides = [1, 1]} : vector<2x128xf32> to vector<2x32xf32>
    %132 = arith.negf %131 : vector<2x32xf32>
    %133 = math.exp %132 : vector<2x32xf32>
    %cst_45 = arith.constant 1.000000e+00 : f32
    %134 = vector.broadcast %cst_45 : f32 to vector<2x32xf32>
    %135 = arith.addf %134, %133 : vector<2x32xf32>
    %136 = arith.divf %134, %135 : vector<2x32xf32>
    %137 = arith.mulf %128, %79 : vector<2x32xf32>
    %138 = arith.mulf %122, %130 : vector<2x32xf32>
    %139 = arith.addf %137, %138 : vector<2x32xf32>
    %140 = math.tanh %139 : vector<2x32xf32>
    %141 = arith.mulf %136, %140 : vector<2x32xf32>
    %142 = vector.extract_strided_slice %6 {offsets = [4, 0], sizes = [2, 128], strides = [1, 1]} : vector<16x128xf32> to vector<2x128xf32>
    %c0_46 = arith.constant 0 : index
    %c0_47 = arith.constant 0 : index
    %143 = vector.load %arg2[%c0_46, %c0_47] : memref<32x128xf32, #tpu.memory_space<vmem>>, vector<32x128xf32>
    %cst_48 = arith.constant dense<0.000000e+00> : vector<2x128xf32>
    %144 = tpu.matmul %110, %143, %cst_48 {dimension_numbers = #tpu.dot_dimension_numbers<[1], [0], [0], [1], [0, 0, 1, 1], [], []>} : vector<2x32xf32>, vector<32x128xf32>, vector<2x128xf32> -> vector<2x128xf32>
    %145 = arith.addf %142, %144 : vector<2x128xf32>
    %146 = vector.extract_strided_slice %145 {offsets = [0, 0], sizes = [2, 32], strides = [1, 1]} : vector<2x128xf32> to vector<2x32xf32>
    %147 = arith.negf %146 : vector<2x32xf32>
    %148 = math.exp %147 : vector<2x32xf32>
    %cst_49 = arith.constant 1.000000e+00 : f32
    %149 = vector.broadcast %cst_49 : f32 to vector<2x32xf32>
    %150 = arith.addf %149, %148 : vector<2x32xf32>
    %151 = arith.divf %149, %150 : vector<2x32xf32>
    %152 = vector.extract_strided_slice %145 {offsets = [0, 32], sizes = [2, 32], strides = [1, 1]} : vector<2x128xf32> to vector<2x32xf32>
    %153 = arith.negf %152 : vector<2x32xf32>
    %154 = math.exp %153 : vector<2x32xf32>
    %cst_50 = arith.constant 1.000000e+00 : f32
    %155 = vector.broadcast %cst_50 : f32 to vector<2x32xf32>
    %156 = arith.addf %155, %154 : vector<2x32xf32>
    %157 = arith.divf %155, %156 : vector<2x32xf32>
    %158 = vector.extract_strided_slice %145 {offsets = [0, 64], sizes = [2, 32], strides = [1, 1]} : vector<2x128xf32> to vector<2x32xf32>
    %159 = math.tanh %158 : vector<2x32xf32>
    %160 = vector.extract_strided_slice %145 {offsets = [0, 96], sizes = [2, 32], strides = [1, 1]} : vector<2x128xf32> to vector<2x32xf32>
    %161 = arith.negf %160 : vector<2x32xf32>
    %162 = math.exp %161 : vector<2x32xf32>
    %cst_51 = arith.constant 1.000000e+00 : f32
    %163 = vector.broadcast %cst_51 : f32 to vector<2x32xf32>
    %164 = arith.addf %163, %162 : vector<2x32xf32>
    %165 = arith.divf %163, %164 : vector<2x32xf32>
    %166 = arith.mulf %157, %108 : vector<2x32xf32>
    %167 = arith.mulf %151, %159 : vector<2x32xf32>
    %168 = arith.addf %166, %167 : vector<2x32xf32>
    %169 = math.tanh %168 : vector<2x32xf32>
    %170 = arith.mulf %165, %169 : vector<2x32xf32>
    %c0_52 = arith.constant 0 : index
    %c0_53 = arith.constant 0 : index
    %171 = vector.load %arg4[%c0_52, %c0_53] : memref<32x128xf32, #tpu.memory_space<vmem>>, vector<32x128xf32>
    %cst_54 = arith.constant dense<0.000000e+00> : vector<2x128xf32>
    %172 = tpu.matmul %170, %171, %cst_54 {dimension_numbers = #tpu.dot_dimension_numbers<[1], [0], [0], [1], [0, 0, 1, 1], [], []>} : vector<2x32xf32>, vector<32x128xf32>, vector<2x128xf32> -> vector<2x128xf32>
    %c0_55 = arith.constant 0 : index
    %c0_56 = arith.constant 0 : index
    %173 = vector.load %arg5[%c0_55, %c0_56] : memref<32x128xf32, #tpu.memory_space<vmem>>, vector<32x128xf32>
    %cst_57 = arith.constant dense<0.000000e+00> : vector<2x128xf32>
    %174 = tpu.matmul %141, %173, %cst_57 {dimension_numbers = #tpu.dot_dimension_numbers<[1], [0], [0], [1], [0, 0, 1, 1], [], []>} : vector<2x32xf32>, vector<32x128xf32>, vector<2x128xf32> -> vector<2x128xf32>
    %175 = arith.addf %172, %174 : vector<2x128xf32>
    %176 = arith.addf %175, %20 : vector<2x128xf32>
    %177 = vector.extract_strided_slice %176 {offsets = [0, 0], sizes = [2, 32], strides = [1, 1]} : vector<2x128xf32> to vector<2x32xf32>
    %178 = arith.negf %177 : vector<2x32xf32>
    %179 = math.exp %178 : vector<2x32xf32>
    %cst_58 = arith.constant 1.000000e+00 : f32
    %180 = vector.broadcast %cst_58 : f32 to vector<2x32xf32>
    %181 = arith.addf %180, %179 : vector<2x32xf32>
    %182 = arith.divf %180, %181 : vector<2x32xf32>
    %183 = vector.extract_strided_slice %176 {offsets = [0, 32], sizes = [2, 32], strides = [1, 1]} : vector<2x128xf32> to vector<2x32xf32>
    %184 = arith.negf %183 : vector<2x32xf32>
    %185 = math.exp %184 : vector<2x32xf32>
    %cst_59 = arith.constant 1.000000e+00 : f32
    %186 = vector.broadcast %cst_59 : f32 to vector<2x32xf32>
    %187 = arith.addf %186, %185 : vector<2x32xf32>
    %188 = arith.divf %186, %187 : vector<2x32xf32>
    %189 = vector.extract_strided_slice %176 {offsets = [0, 64], sizes = [2, 32], strides = [1, 1]} : vector<2x128xf32> to vector<2x32xf32>
    %190 = math.tanh %189 : vector<2x32xf32>
    %191 = vector.extract_strided_slice %176 {offsets = [0, 96], sizes = [2, 32], strides = [1, 1]} : vector<2x128xf32> to vector<2x32xf32>
    %192 = arith.negf %191 : vector<2x32xf32>
    %193 = math.exp %192 : vector<2x32xf32>
    %cst_60 = arith.constant 1.000000e+00 : f32
    %194 = vector.broadcast %cst_60 : f32 to vector<2x32xf32>
    %195 = arith.addf %194, %193 : vector<2x32xf32>
    %196 = arith.divf %194, %195 : vector<2x32xf32>
    %197 = arith.mulf %188, %139 : vector<2x32xf32>
    %198 = arith.mulf %182, %190 : vector<2x32xf32>
    %199 = arith.addf %197, %198 : vector<2x32xf32>
    %200 = math.tanh %199 : vector<2x32xf32>
    %201 = arith.mulf %196, %200 : vector<2x32xf32>
    %202 = vector.extract_strided_slice %6 {offsets = [6, 0], sizes = [2, 128], strides = [1, 1]} : vector<16x128xf32> to vector<2x128xf32>
    %c0_61 = arith.constant 0 : index
    %c0_62 = arith.constant 0 : index
    %203 = vector.load %arg2[%c0_61, %c0_62] : memref<32x128xf32, #tpu.memory_space<vmem>>, vector<32x128xf32>
    %cst_63 = arith.constant dense<0.000000e+00> : vector<2x128xf32>
    %204 = tpu.matmul %170, %203, %cst_63 {dimension_numbers = #tpu.dot_dimension_numbers<[1], [0], [0], [1], [0, 0, 1, 1], [], []>} : vector<2x32xf32>, vector<32x128xf32>, vector<2x128xf32> -> vector<2x128xf32>
    %205 = arith.addf %202, %204 : vector<2x128xf32>
    %206 = vector.extract_strided_slice %205 {offsets = [0, 0], sizes = [2, 32], strides = [1, 1]} : vector<2x128xf32> to vector<2x32xf32>
    %207 = arith.negf %206 : vector<2x32xf32>
    %208 = math.exp %207 : vector<2x32xf32>
    %cst_64 = arith.constant 1.000000e+00 : f32
    %209 = vector.broadcast %cst_64 : f32 to vector<2x32xf32>
    %210 = arith.addf %209, %208 : vector<2x32xf32>
    %211 = arith.divf %209, %210 : vector<2x32xf32>
    %212 = vector.extract_strided_slice %205 {offsets = [0, 32], sizes = [2, 32], strides = [1, 1]} : vector<2x128xf32> to vector<2x32xf32>
    %213 = arith.negf %212 : vector<2x32xf32>
    %214 = math.exp %213 : vector<2x32xf32>
    %cst_65 = arith.constant 1.000000e+00 : f32
    %215 = vector.broadcast %cst_65 : f32 to vector<2x32xf32>
    %216 = arith.addf %215, %214 : vector<2x32xf32>
    %217 = arith.divf %215, %216 : vector<2x32xf32>
    %218 = vector.extract_strided_slice %205 {offsets = [0, 64], sizes = [2, 32], strides = [1, 1]} : vector<2x128xf32> to vector<2x32xf32>
    %219 = math.tanh %218 : vector<2x32xf32>
    %220 = vector.extract_strided_slice %205 {offsets = [0, 96], sizes = [2, 32], strides = [1, 1]} : vector<2x128xf32> to vector<2x32xf32>
    %221 = arith.negf %220 : vector<2x32xf32>
    %222 = math.exp %221 : vector<2x32xf32>
    %cst_66 = arith.constant 1.000000e+00 : f32
    %223 = vector.broadcast %cst_66 : f32 to vector<2x32xf32>
    %224 = arith.addf %223, %222 : vector<2x32xf32>
    %225 = arith.divf %223, %224 : vector<2x32xf32>
    %226 = arith.mulf %217, %168 : vector<2x32xf32>
    %227 = arith.mulf %211, %219 : vector<2x32xf32>
    %228 = arith.addf %226, %227 : vector<2x32xf32>
    %229 = math.tanh %228 : vector<2x32xf32>
    %230 = arith.mulf %225, %229 : vector<2x32xf32>
    %c0_67 = arith.constant 0 : index
    %c0_68 = arith.constant 0 : index
    %231 = vector.load %arg4[%c0_67, %c0_68] : memref<32x128xf32, #tpu.memory_space<vmem>>, vector<32x128xf32>
    %cst_69 = arith.constant dense<0.000000e+00> : vector<2x128xf32>
    %232 = tpu.matmul %230, %231, %cst_69 {dimension_numbers = #tpu.dot_dimension_numbers<[1], [0], [0], [1], [0, 0, 1, 1], [], []>} : vector<2x32xf32>, vector<32x128xf32>, vector<2x128xf32> -> vector<2x128xf32>
    %c0_70 = arith.constant 0 : index
    %c0_71 = arith.constant 0 : index
    %233 = vector.load %arg5[%c0_70, %c0_71] : memref<32x128xf32, #tpu.memory_space<vmem>>, vector<32x128xf32>
    %cst_72 = arith.constant dense<0.000000e+00> : vector<2x128xf32>
    %234 = tpu.matmul %201, %233, %cst_72 {dimension_numbers = #tpu.dot_dimension_numbers<[1], [0], [0], [1], [0, 0, 1, 1], [], []>} : vector<2x32xf32>, vector<32x128xf32>, vector<2x128xf32> -> vector<2x128xf32>
    %235 = arith.addf %232, %234 : vector<2x128xf32>
    %236 = arith.addf %235, %20 : vector<2x128xf32>
    %237 = vector.extract_strided_slice %236 {offsets = [0, 0], sizes = [2, 32], strides = [1, 1]} : vector<2x128xf32> to vector<2x32xf32>
    %238 = arith.negf %237 : vector<2x32xf32>
    %239 = math.exp %238 : vector<2x32xf32>
    %cst_73 = arith.constant 1.000000e+00 : f32
    %240 = vector.broadcast %cst_73 : f32 to vector<2x32xf32>
    %241 = arith.addf %240, %239 : vector<2x32xf32>
    %242 = arith.divf %240, %241 : vector<2x32xf32>
    %243 = vector.extract_strided_slice %236 {offsets = [0, 32], sizes = [2, 32], strides = [1, 1]} : vector<2x128xf32> to vector<2x32xf32>
    %244 = arith.negf %243 : vector<2x32xf32>
    %245 = math.exp %244 : vector<2x32xf32>
    %cst_74 = arith.constant 1.000000e+00 : f32
    %246 = vector.broadcast %cst_74 : f32 to vector<2x32xf32>
    %247 = arith.addf %246, %245 : vector<2x32xf32>
    %248 = arith.divf %246, %247 : vector<2x32xf32>
    %249 = vector.extract_strided_slice %236 {offsets = [0, 64], sizes = [2, 32], strides = [1, 1]} : vector<2x128xf32> to vector<2x32xf32>
    %250 = math.tanh %249 : vector<2x32xf32>
    %251 = vector.extract_strided_slice %236 {offsets = [0, 96], sizes = [2, 32], strides = [1, 1]} : vector<2x128xf32> to vector<2x32xf32>
    %252 = arith.negf %251 : vector<2x32xf32>
    %253 = math.exp %252 : vector<2x32xf32>
    %cst_75 = arith.constant 1.000000e+00 : f32
    %254 = vector.broadcast %cst_75 : f32 to vector<2x32xf32>
    %255 = arith.addf %254, %253 : vector<2x32xf32>
    %256 = arith.divf %254, %255 : vector<2x32xf32>
    %257 = arith.mulf %248, %199 : vector<2x32xf32>
    %258 = arith.mulf %242, %250 : vector<2x32xf32>
    %259 = arith.addf %257, %258 : vector<2x32xf32>
    %260 = math.tanh %259 : vector<2x32xf32>
    %261 = arith.mulf %256, %260 : vector<2x32xf32>
    %262 = vector.extract_strided_slice %6 {offsets = [8, 0], sizes = [2, 128], strides = [1, 1]} : vector<16x128xf32> to vector<2x128xf32>
    %c0_76 = arith.constant 0 : index
    %c0_77 = arith.constant 0 : index
    %263 = vector.load %arg2[%c0_76, %c0_77] : memref<32x128xf32, #tpu.memory_space<vmem>>, vector<32x128xf32>
    %cst_78 = arith.constant dense<0.000000e+00> : vector<2x128xf32>
    %264 = tpu.matmul %230, %263, %cst_78 {dimension_numbers = #tpu.dot_dimension_numbers<[1], [0], [0], [1], [0, 0, 1, 1], [], []>} : vector<2x32xf32>, vector<32x128xf32>, vector<2x128xf32> -> vector<2x128xf32>
    %265 = arith.addf %262, %264 : vector<2x128xf32>
    %266 = vector.extract_strided_slice %265 {offsets = [0, 0], sizes = [2, 32], strides = [1, 1]} : vector<2x128xf32> to vector<2x32xf32>
    %267 = arith.negf %266 : vector<2x32xf32>
    %268 = math.exp %267 : vector<2x32xf32>
    %cst_79 = arith.constant 1.000000e+00 : f32
    %269 = vector.broadcast %cst_79 : f32 to vector<2x32xf32>
    %270 = arith.addf %269, %268 : vector<2x32xf32>
    %271 = arith.divf %269, %270 : vector<2x32xf32>
    %272 = vector.extract_strided_slice %265 {offsets = [0, 32], sizes = [2, 32], strides = [1, 1]} : vector<2x128xf32> to vector<2x32xf32>
    %273 = arith.negf %272 : vector<2x32xf32>
    %274 = math.exp %273 : vector<2x32xf32>
    %cst_80 = arith.constant 1.000000e+00 : f32
    %275 = vector.broadcast %cst_80 : f32 to vector<2x32xf32>
    %276 = arith.addf %275, %274 : vector<2x32xf32>
    %277 = arith.divf %275, %276 : vector<2x32xf32>
    %278 = vector.extract_strided_slice %265 {offsets = [0, 64], sizes = [2, 32], strides = [1, 1]} : vector<2x128xf32> to vector<2x32xf32>
    %279 = math.tanh %278 : vector<2x32xf32>
    %280 = vector.extract_strided_slice %265 {offsets = [0, 96], sizes = [2, 32], strides = [1, 1]} : vector<2x128xf32> to vector<2x32xf32>
    %281 = arith.negf %280 : vector<2x32xf32>
    %282 = math.exp %281 : vector<2x32xf32>
    %cst_81 = arith.constant 1.000000e+00 : f32
    %283 = vector.broadcast %cst_81 : f32 to vector<2x32xf32>
    %284 = arith.addf %283, %282 : vector<2x32xf32>
    %285 = arith.divf %283, %284 : vector<2x32xf32>
    %286 = arith.mulf %277, %228 : vector<2x32xf32>
    %287 = arith.mulf %271, %279 : vector<2x32xf32>
    %288 = arith.addf %286, %287 : vector<2x32xf32>
    %289 = math.tanh %288 : vector<2x32xf32>
    %290 = arith.mulf %285, %289 : vector<2x32xf32>
    %c0_82 = arith.constant 0 : index
    %c0_83 = arith.constant 0 : index
    %291 = vector.load %arg4[%c0_82, %c0_83] : memref<32x128xf32, #tpu.memory_space<vmem>>, vector<32x128xf32>
    %cst_84 = arith.constant dense<0.000000e+00> : vector<2x128xf32>
    %292 = tpu.matmul %290, %291, %cst_84 {dimension_numbers = #tpu.dot_dimension_numbers<[1], [0], [0], [1], [0, 0, 1, 1], [], []>} : vector<2x32xf32>, vector<32x128xf32>, vector<2x128xf32> -> vector<2x128xf32>
    %c0_85 = arith.constant 0 : index
    %c0_86 = arith.constant 0 : index
    %293 = vector.load %arg5[%c0_85, %c0_86] : memref<32x128xf32, #tpu.memory_space<vmem>>, vector<32x128xf32>
    %cst_87 = arith.constant dense<0.000000e+00> : vector<2x128xf32>
    %294 = tpu.matmul %261, %293, %cst_87 {dimension_numbers = #tpu.dot_dimension_numbers<[1], [0], [0], [1], [0, 0, 1, 1], [], []>} : vector<2x32xf32>, vector<32x128xf32>, vector<2x128xf32> -> vector<2x128xf32>
    %295 = arith.addf %292, %294 : vector<2x128xf32>
    %296 = arith.addf %295, %20 : vector<2x128xf32>
    %297 = vector.extract_strided_slice %296 {offsets = [0, 0], sizes = [2, 32], strides = [1, 1]} : vector<2x128xf32> to vector<2x32xf32>
    %298 = arith.negf %297 : vector<2x32xf32>
    %299 = math.exp %298 : vector<2x32xf32>
    %cst_88 = arith.constant 1.000000e+00 : f32
    %300 = vector.broadcast %cst_88 : f32 to vector<2x32xf32>
    %301 = arith.addf %300, %299 : vector<2x32xf32>
    %302 = arith.divf %300, %301 : vector<2x32xf32>
    %303 = vector.extract_strided_slice %296 {offsets = [0, 32], sizes = [2, 32], strides = [1, 1]} : vector<2x128xf32> to vector<2x32xf32>
    %304 = arith.negf %303 : vector<2x32xf32>
    %305 = math.exp %304 : vector<2x32xf32>
    %cst_89 = arith.constant 1.000000e+00 : f32
    %306 = vector.broadcast %cst_89 : f32 to vector<2x32xf32>
    %307 = arith.addf %306, %305 : vector<2x32xf32>
    %308 = arith.divf %306, %307 : vector<2x32xf32>
    %309 = vector.extract_strided_slice %296 {offsets = [0, 64], sizes = [2, 32], strides = [1, 1]} : vector<2x128xf32> to vector<2x32xf32>
    %310 = math.tanh %309 : vector<2x32xf32>
    %311 = vector.extract_strided_slice %296 {offsets = [0, 96], sizes = [2, 32], strides = [1, 1]} : vector<2x128xf32> to vector<2x32xf32>
    %312 = arith.negf %311 : vector<2x32xf32>
    %313 = math.exp %312 : vector<2x32xf32>
    %cst_90 = arith.constant 1.000000e+00 : f32
    %314 = vector.broadcast %cst_90 : f32 to vector<2x32xf32>
    %315 = arith.addf %314, %313 : vector<2x32xf32>
    %316 = arith.divf %314, %315 : vector<2x32xf32>
    %317 = arith.mulf %308, %259 : vector<2x32xf32>
    %318 = arith.mulf %302, %310 : vector<2x32xf32>
    %319 = arith.addf %317, %318 : vector<2x32xf32>
    %320 = math.tanh %319 : vector<2x32xf32>
    %321 = arith.mulf %316, %320 : vector<2x32xf32>
    %322 = vector.extract_strided_slice %6 {offsets = [10, 0], sizes = [2, 128], strides = [1, 1]} : vector<16x128xf32> to vector<2x128xf32>
    %c0_91 = arith.constant 0 : index
    %c0_92 = arith.constant 0 : index
    %323 = vector.load %arg2[%c0_91, %c0_92] : memref<32x128xf32, #tpu.memory_space<vmem>>, vector<32x128xf32>
    %cst_93 = arith.constant dense<0.000000e+00> : vector<2x128xf32>
    %324 = tpu.matmul %290, %323, %cst_93 {dimension_numbers = #tpu.dot_dimension_numbers<[1], [0], [0], [1], [0, 0, 1, 1], [], []>} : vector<2x32xf32>, vector<32x128xf32>, vector<2x128xf32> -> vector<2x128xf32>
    %325 = arith.addf %322, %324 : vector<2x128xf32>
    %326 = vector.extract_strided_slice %325 {offsets = [0, 0], sizes = [2, 32], strides = [1, 1]} : vector<2x128xf32> to vector<2x32xf32>
    %327 = arith.negf %326 : vector<2x32xf32>
    %328 = math.exp %327 : vector<2x32xf32>
    %cst_94 = arith.constant 1.000000e+00 : f32
    %329 = vector.broadcast %cst_94 : f32 to vector<2x32xf32>
    %330 = arith.addf %329, %328 : vector<2x32xf32>
    %331 = arith.divf %329, %330 : vector<2x32xf32>
    %332 = vector.extract_strided_slice %325 {offsets = [0, 32], sizes = [2, 32], strides = [1, 1]} : vector<2x128xf32> to vector<2x32xf32>
    %333 = arith.negf %332 : vector<2x32xf32>
    %334 = math.exp %333 : vector<2x32xf32>
    %cst_95 = arith.constant 1.000000e+00 : f32
    %335 = vector.broadcast %cst_95 : f32 to vector<2x32xf32>
    %336 = arith.addf %335, %334 : vector<2x32xf32>
    %337 = arith.divf %335, %336 : vector<2x32xf32>
    %338 = vector.extract_strided_slice %325 {offsets = [0, 64], sizes = [2, 32], strides = [1, 1]} : vector<2x128xf32> to vector<2x32xf32>
    %339 = math.tanh %338 : vector<2x32xf32>
    %340 = vector.extract_strided_slice %325 {offsets = [0, 96], sizes = [2, 32], strides = [1, 1]} : vector<2x128xf32> to vector<2x32xf32>
    %341 = arith.negf %340 : vector<2x32xf32>
    %342 = math.exp %341 : vector<2x32xf32>
    %cst_96 = arith.constant 1.000000e+00 : f32
    %343 = vector.broadcast %cst_96 : f32 to vector<2x32xf32>
    %344 = arith.addf %343, %342 : vector<2x32xf32>
    %345 = arith.divf %343, %344 : vector<2x32xf32>
    %346 = arith.mulf %337, %288 : vector<2x32xf32>
    %347 = arith.mulf %331, %339 : vector<2x32xf32>
    %348 = arith.addf %346, %347 : vector<2x32xf32>
    %349 = math.tanh %348 : vector<2x32xf32>
    %350 = arith.mulf %345, %349 : vector<2x32xf32>
    %c0_97 = arith.constant 0 : index
    %c0_98 = arith.constant 0 : index
    %351 = vector.load %arg4[%c0_97, %c0_98] : memref<32x128xf32, #tpu.memory_space<vmem>>, vector<32x128xf32>
    %cst_99 = arith.constant dense<0.000000e+00> : vector<2x128xf32>
    %352 = tpu.matmul %350, %351, %cst_99 {dimension_numbers = #tpu.dot_dimension_numbers<[1], [0], [0], [1], [0, 0, 1, 1], [], []>} : vector<2x32xf32>, vector<32x128xf32>, vector<2x128xf32> -> vector<2x128xf32>
    %c0_100 = arith.constant 0 : index
    %c0_101 = arith.constant 0 : index
    %353 = vector.load %arg5[%c0_100, %c0_101] : memref<32x128xf32, #tpu.memory_space<vmem>>, vector<32x128xf32>
    %cst_102 = arith.constant dense<0.000000e+00> : vector<2x128xf32>
    %354 = tpu.matmul %321, %353, %cst_102 {dimension_numbers = #tpu.dot_dimension_numbers<[1], [0], [0], [1], [0, 0, 1, 1], [], []>} : vector<2x32xf32>, vector<32x128xf32>, vector<2x128xf32> -> vector<2x128xf32>
    %355 = arith.addf %352, %354 : vector<2x128xf32>
    %356 = arith.addf %355, %20 : vector<2x128xf32>
    %357 = vector.extract_strided_slice %356 {offsets = [0, 0], sizes = [2, 32], strides = [1, 1]} : vector<2x128xf32> to vector<2x32xf32>
    %358 = arith.negf %357 : vector<2x32xf32>
    %359 = math.exp %358 : vector<2x32xf32>
    %cst_103 = arith.constant 1.000000e+00 : f32
    %360 = vector.broadcast %cst_103 : f32 to vector<2x32xf32>
    %361 = arith.addf %360, %359 : vector<2x32xf32>
    %362 = arith.divf %360, %361 : vector<2x32xf32>
    %363 = vector.extract_strided_slice %356 {offsets = [0, 32], sizes = [2, 32], strides = [1, 1]} : vector<2x128xf32> to vector<2x32xf32>
    %364 = arith.negf %363 : vector<2x32xf32>
    %365 = math.exp %364 : vector<2x32xf32>
    %cst_104 = arith.constant 1.000000e+00 : f32
    %366 = vector.broadcast %cst_104 : f32 to vector<2x32xf32>
    %367 = arith.addf %366, %365 : vector<2x32xf32>
    %368 = arith.divf %366, %367 : vector<2x32xf32>
    %369 = vector.extract_strided_slice %356 {offsets = [0, 64], sizes = [2, 32], strides = [1, 1]} : vector<2x128xf32> to vector<2x32xf32>
    %370 = math.tanh %369 : vector<2x32xf32>
    %371 = vector.extract_strided_slice %356 {offsets = [0, 96], sizes = [2, 32], strides = [1, 1]} : vector<2x128xf32> to vector<2x32xf32>
    %372 = arith.negf %371 : vector<2x32xf32>
    %373 = math.exp %372 : vector<2x32xf32>
    %cst_105 = arith.constant 1.000000e+00 : f32
    %374 = vector.broadcast %cst_105 : f32 to vector<2x32xf32>
    %375 = arith.addf %374, %373 : vector<2x32xf32>
    %376 = arith.divf %374, %375 : vector<2x32xf32>
    %377 = arith.mulf %368, %319 : vector<2x32xf32>
    %378 = arith.mulf %362, %370 : vector<2x32xf32>
    %379 = arith.addf %377, %378 : vector<2x32xf32>
    %380 = math.tanh %379 : vector<2x32xf32>
    %381 = arith.mulf %376, %380 : vector<2x32xf32>
    %382 = vector.extract_strided_slice %6 {offsets = [12, 0], sizes = [2, 128], strides = [1, 1]} : vector<16x128xf32> to vector<2x128xf32>
    %c0_106 = arith.constant 0 : index
    %c0_107 = arith.constant 0 : index
    %383 = vector.load %arg2[%c0_106, %c0_107] : memref<32x128xf32, #tpu.memory_space<vmem>>, vector<32x128xf32>
    %cst_108 = arith.constant dense<0.000000e+00> : vector<2x128xf32>
    %384 = tpu.matmul %350, %383, %cst_108 {dimension_numbers = #tpu.dot_dimension_numbers<[1], [0], [0], [1], [0, 0, 1, 1], [], []>} : vector<2x32xf32>, vector<32x128xf32>, vector<2x128xf32> -> vector<2x128xf32>
    %385 = arith.addf %382, %384 : vector<2x128xf32>
    %386 = vector.extract_strided_slice %385 {offsets = [0, 0], sizes = [2, 32], strides = [1, 1]} : vector<2x128xf32> to vector<2x32xf32>
    %387 = arith.negf %386 : vector<2x32xf32>
    %388 = math.exp %387 : vector<2x32xf32>
    %cst_109 = arith.constant 1.000000e+00 : f32
    %389 = vector.broadcast %cst_109 : f32 to vector<2x32xf32>
    %390 = arith.addf %389, %388 : vector<2x32xf32>
    %391 = arith.divf %389, %390 : vector<2x32xf32>
    %392 = vector.extract_strided_slice %385 {offsets = [0, 32], sizes = [2, 32], strides = [1, 1]} : vector<2x128xf32> to vector<2x32xf32>
    %393 = arith.negf %392 : vector<2x32xf32>
    %394 = math.exp %393 : vector<2x32xf32>
    %cst_110 = arith.constant 1.000000e+00 : f32
    %395 = vector.broadcast %cst_110 : f32 to vector<2x32xf32>
    %396 = arith.addf %395, %394 : vector<2x32xf32>
    %397 = arith.divf %395, %396 : vector<2x32xf32>
    %398 = vector.extract_strided_slice %385 {offsets = [0, 64], sizes = [2, 32], strides = [1, 1]} : vector<2x128xf32> to vector<2x32xf32>
    %399 = math.tanh %398 : vector<2x32xf32>
    %400 = vector.extract_strided_slice %385 {offsets = [0, 96], sizes = [2, 32], strides = [1, 1]} : vector<2x128xf32> to vector<2x32xf32>
    %401 = arith.negf %400 : vector<2x32xf32>
    %402 = math.exp %401 : vector<2x32xf32>
    %cst_111 = arith.constant 1.000000e+00 : f32
    %403 = vector.broadcast %cst_111 : f32 to vector<2x32xf32>
    %404 = arith.addf %403, %402 : vector<2x32xf32>
    %405 = arith.divf %403, %404 : vector<2x32xf32>
    %406 = arith.mulf %397, %348 : vector<2x32xf32>
    %407 = arith.mulf %391, %399 : vector<2x32xf32>
    %408 = arith.addf %406, %407 : vector<2x32xf32>
    %409 = math.tanh %408 : vector<2x32xf32>
    %410 = arith.mulf %405, %409 : vector<2x32xf32>
    %c0_112 = arith.constant 0 : index
    %c0_113 = arith.constant 0 : index
    %411 = vector.load %arg4[%c0_112, %c0_113] : memref<32x128xf32, #tpu.memory_space<vmem>>, vector<32x128xf32>
    %cst_114 = arith.constant dense<0.000000e+00> : vector<2x128xf32>
    %412 = tpu.matmul %410, %411, %cst_114 {dimension_numbers = #tpu.dot_dimension_numbers<[1], [0], [0], [1], [0, 0, 1, 1], [], []>} : vector<2x32xf32>, vector<32x128xf32>, vector<2x128xf32> -> vector<2x128xf32>
    %c0_115 = arith.constant 0 : index
    %c0_116 = arith.constant 0 : index
    %413 = vector.load %arg5[%c0_115, %c0_116] : memref<32x128xf32, #tpu.memory_space<vmem>>, vector<32x128xf32>
    %cst_117 = arith.constant dense<0.000000e+00> : vector<2x128xf32>
    %414 = tpu.matmul %381, %413, %cst_117 {dimension_numbers = #tpu.dot_dimension_numbers<[1], [0], [0], [1], [0, 0, 1, 1], [], []>} : vector<2x32xf32>, vector<32x128xf32>, vector<2x128xf32> -> vector<2x128xf32>
    %415 = arith.addf %412, %414 : vector<2x128xf32>
    %416 = arith.addf %415, %20 : vector<2x128xf32>
    %417 = vector.extract_strided_slice %416 {offsets = [0, 0], sizes = [2, 32], strides = [1, 1]} : vector<2x128xf32> to vector<2x32xf32>
    %418 = arith.negf %417 : vector<2x32xf32>
    %419 = math.exp %418 : vector<2x32xf32>
    %cst_118 = arith.constant 1.000000e+00 : f32
    %420 = vector.broadcast %cst_118 : f32 to vector<2x32xf32>
    %421 = arith.addf %420, %419 : vector<2x32xf32>
    %422 = arith.divf %420, %421 : vector<2x32xf32>
    %423 = vector.extract_strided_slice %416 {offsets = [0, 32], sizes = [2, 32], strides = [1, 1]} : vector<2x128xf32> to vector<2x32xf32>
    %424 = arith.negf %423 : vector<2x32xf32>
    %425 = math.exp %424 : vector<2x32xf32>
    %cst_119 = arith.constant 1.000000e+00 : f32
    %426 = vector.broadcast %cst_119 : f32 to vector<2x32xf32>
    %427 = arith.addf %426, %425 : vector<2x32xf32>
    %428 = arith.divf %426, %427 : vector<2x32xf32>
    %429 = vector.extract_strided_slice %416 {offsets = [0, 64], sizes = [2, 32], strides = [1, 1]} : vector<2x128xf32> to vector<2x32xf32>
    %430 = math.tanh %429 : vector<2x32xf32>
    %431 = vector.extract_strided_slice %416 {offsets = [0, 96], sizes = [2, 32], strides = [1, 1]} : vector<2x128xf32> to vector<2x32xf32>
    %432 = arith.negf %431 : vector<2x32xf32>
    %433 = math.exp %432 : vector<2x32xf32>
    %cst_120 = arith.constant 1.000000e+00 : f32
    %434 = vector.broadcast %cst_120 : f32 to vector<2x32xf32>
    %435 = arith.addf %434, %433 : vector<2x32xf32>
    %436 = arith.divf %434, %435 : vector<2x32xf32>
    %437 = arith.mulf %428, %379 : vector<2x32xf32>
    %438 = arith.mulf %422, %430 : vector<2x32xf32>
    %439 = arith.addf %437, %438 : vector<2x32xf32>
    %440 = math.tanh %439 : vector<2x32xf32>
    %441 = arith.mulf %436, %440 : vector<2x32xf32>
    %442 = vector.extract_strided_slice %6 {offsets = [14, 0], sizes = [2, 128], strides = [1, 1]} : vector<16x128xf32> to vector<2x128xf32>
    %c0_121 = arith.constant 0 : index
    %c0_122 = arith.constant 0 : index
    %443 = vector.load %arg2[%c0_121, %c0_122] : memref<32x128xf32, #tpu.memory_space<vmem>>, vector<32x128xf32>
    %cst_123 = arith.constant dense<0.000000e+00> : vector<2x128xf32>
    %444 = tpu.matmul %410, %443, %cst_123 {dimension_numbers = #tpu.dot_dimension_numbers<[1], [0], [0], [1], [0, 0, 1, 1], [], []>} : vector<2x32xf32>, vector<32x128xf32>, vector<2x128xf32> -> vector<2x128xf32>
    %445 = arith.addf %442, %444 : vector<2x128xf32>
    %446 = vector.extract_strided_slice %445 {offsets = [0, 0], sizes = [2, 32], strides = [1, 1]} : vector<2x128xf32> to vector<2x32xf32>
    %447 = arith.negf %446 : vector<2x32xf32>
    %448 = math.exp %447 : vector<2x32xf32>
    %cst_124 = arith.constant 1.000000e+00 : f32
    %449 = vector.broadcast %cst_124 : f32 to vector<2x32xf32>
    %450 = arith.addf %449, %448 : vector<2x32xf32>
    %451 = arith.divf %449, %450 : vector<2x32xf32>
    %452 = vector.extract_strided_slice %445 {offsets = [0, 32], sizes = [2, 32], strides = [1, 1]} : vector<2x128xf32> to vector<2x32xf32>
    %453 = arith.negf %452 : vector<2x32xf32>
    %454 = math.exp %453 : vector<2x32xf32>
    %cst_125 = arith.constant 1.000000e+00 : f32
    %455 = vector.broadcast %cst_125 : f32 to vector<2x32xf32>
    %456 = arith.addf %455, %454 : vector<2x32xf32>
    %457 = arith.divf %455, %456 : vector<2x32xf32>
    %458 = vector.extract_strided_slice %445 {offsets = [0, 64], sizes = [2, 32], strides = [1, 1]} : vector<2x128xf32> to vector<2x32xf32>
    %459 = math.tanh %458 : vector<2x32xf32>
    %460 = vector.extract_strided_slice %445 {offsets = [0, 96], sizes = [2, 32], strides = [1, 1]} : vector<2x128xf32> to vector<2x32xf32>
    %461 = arith.negf %460 : vector<2x32xf32>
    %462 = math.exp %461 : vector<2x32xf32>
    %cst_126 = arith.constant 1.000000e+00 : f32
    %463 = vector.broadcast %cst_126 : f32 to vector<2x32xf32>
    %464 = arith.addf %463, %462 : vector<2x32xf32>
    %465 = arith.divf %463, %464 : vector<2x32xf32>
    %466 = arith.mulf %457, %408 : vector<2x32xf32>
    %467 = arith.mulf %451, %459 : vector<2x32xf32>
    %468 = arith.addf %466, %467 : vector<2x32xf32>
    %469 = math.tanh %468 : vector<2x32xf32>
    %470 = arith.mulf %465, %469 : vector<2x32xf32>
    %c0_127 = arith.constant 0 : index
    %c0_128 = arith.constant 0 : index
    %471 = vector.load %arg4[%c0_127, %c0_128] : memref<32x128xf32, #tpu.memory_space<vmem>>, vector<32x128xf32>
    %cst_129 = arith.constant dense<0.000000e+00> : vector<2x128xf32>
    %472 = tpu.matmul %470, %471, %cst_129 {dimension_numbers = #tpu.dot_dimension_numbers<[1], [0], [0], [1], [0, 0, 1, 1], [], []>} : vector<2x32xf32>, vector<32x128xf32>, vector<2x128xf32> -> vector<2x128xf32>
    %c0_130 = arith.constant 0 : index
    %c0_131 = arith.constant 0 : index
    %473 = vector.load %arg5[%c0_130, %c0_131] : memref<32x128xf32, #tpu.memory_space<vmem>>, vector<32x128xf32>
    %cst_132 = arith.constant dense<0.000000e+00> : vector<2x128xf32>
    %474 = tpu.matmul %441, %473, %cst_132 {dimension_numbers = #tpu.dot_dimension_numbers<[1], [0], [0], [1], [0, 0, 1, 1], [], []>} : vector<2x32xf32>, vector<32x128xf32>, vector<2x128xf32> -> vector<2x128xf32>
    %475 = arith.addf %472, %474 : vector<2x128xf32>
    %476 = arith.addf %475, %20 : vector<2x128xf32>
    %477 = vector.extract_strided_slice %476 {offsets = [0, 0], sizes = [2, 32], strides = [1, 1]} : vector<2x128xf32> to vector<2x32xf32>
    %478 = arith.negf %477 : vector<2x32xf32>
    %479 = math.exp %478 : vector<2x32xf32>
    %cst_133 = arith.constant 1.000000e+00 : f32
    %480 = vector.broadcast %cst_133 : f32 to vector<2x32xf32>
    %481 = arith.addf %480, %479 : vector<2x32xf32>
    %482 = arith.divf %480, %481 : vector<2x32xf32>
    %483 = vector.extract_strided_slice %476 {offsets = [0, 32], sizes = [2, 32], strides = [1, 1]} : vector<2x128xf32> to vector<2x32xf32>
    %484 = arith.negf %483 : vector<2x32xf32>
    %485 = math.exp %484 : vector<2x32xf32>
    %cst_134 = arith.constant 1.000000e+00 : f32
    %486 = vector.broadcast %cst_134 : f32 to vector<2x32xf32>
    %487 = arith.addf %486, %485 : vector<2x32xf32>
    %488 = arith.divf %486, %487 : vector<2x32xf32>
    %489 = vector.extract_strided_slice %476 {offsets = [0, 64], sizes = [2, 32], strides = [1, 1]} : vector<2x128xf32> to vector<2x32xf32>
    %490 = math.tanh %489 : vector<2x32xf32>
    %491 = vector.extract_strided_slice %476 {offsets = [0, 96], sizes = [2, 32], strides = [1, 1]} : vector<2x128xf32> to vector<2x32xf32>
    %492 = arith.negf %491 : vector<2x32xf32>
    %493 = math.exp %492 : vector<2x32xf32>
    %cst_135 = arith.constant 1.000000e+00 : f32
    %494 = vector.broadcast %cst_135 : f32 to vector<2x32xf32>
    %495 = arith.addf %494, %493 : vector<2x32xf32>
    %496 = arith.divf %494, %495 : vector<2x32xf32>
    %497 = arith.mulf %488, %439 : vector<2x32xf32>
    %498 = arith.mulf %482, %490 : vector<2x32xf32>
    %499 = arith.addf %497, %498 : vector<2x32xf32>
    %500 = math.tanh %499 : vector<2x32xf32>
    %501 = arith.mulf %496, %500 : vector<2x32xf32>
    %502 = tpu.concatenate %81, %141, %201, %261, %321, %381, %441, %501 in 0 : vector<2x32xf32>, vector<2x32xf32>, vector<2x32xf32>, vector<2x32xf32>, vector<2x32xf32>, vector<2x32xf32>, vector<2x32xf32>, vector<2x32xf32> -> vector<16x32xf32>
    %c0_136 = arith.constant 0 : index
    %c0_137 = arith.constant 0 : index
    %503 = vector.load %arg7[%c0_136, %c0_137] : memref<32x16xf32, #tpu.memory_space<vmem>>, vector<32x16xf32>
    %cst_138 = arith.constant dense<0.000000e+00> : vector<16x16xf32>
    %504 = tpu.matmul %502, %503, %cst_138 {dimension_numbers = #tpu.dot_dimension_numbers<[1], [0], [0], [1], [0, 0, 1, 1], [], []>} : vector<16x32xf32>, vector<32x16xf32>, vector<16x16xf32> -> vector<16x16xf32>
    %c0_139 = arith.constant 0 : index
    %c0_140 = arith.constant 0 : index
    %505 = vector.load %arg8[%c0_139, %c0_140] : memref<1x16xf32, #tpu.memory_space<vmem>>, vector<1x16xf32>
    %506 = vector.broadcast %505 : vector<1x16xf32> to vector<16x16xf32>
    %507 = arith.addf %504, %506 : vector<16x16xf32>
    %c0_141 = arith.constant 0 : index
    %c0_142 = arith.constant 0 : index
    %508 = vector.load %arg12[%c0_141, %c0_142] : memref<16x16xf32, #tpu.memory_space<vmem>>, vector<16x16xf32>
    %cst_143 = arith.constant dense<0.000000e+00> : vector<16x16xf32>
    %509 = tpu.matmul %507, %508, %cst_143 {dimension_numbers = #tpu.dot_dimension_numbers<[1], [0], [0], [1], [0, 0, 1, 1], [], []>} : vector<16x16xf32>, vector<16x16xf32>, vector<16x16xf32> -> vector<16x16xf32>
    %c0_144 = arith.constant 0 : index
    %c0_145 = arith.constant 0 : index
    %510 = vector.load %arg13[%c0_144, %c0_145] : memref<16x16xf32, #tpu.memory_space<vmem>>, vector<16x16xf32>
    %cst_146 = arith.constant dense<0.000000e+00> : vector<16x16xf32>
    %511 = tpu.matmul %17, %510, %cst_146 {dimension_numbers = #tpu.dot_dimension_numbers<[1], [0], [0], [1], [0, 0, 1, 1], [], []>} : vector<16x16xf32>, vector<16x16xf32>, vector<16x16xf32> -> vector<16x16xf32>
    %512 = arith.addf %509, %511 : vector<16x16xf32>
    %c0_147 = arith.constant 0 : index
    %c0_148 = arith.constant 0 : index
    %513 = vector.load %arg14[%c0_147, %c0_148] : memref<1x16xf32, #tpu.memory_space<vmem>>, vector<1x16xf32>
    %514 = vector.broadcast %513 : vector<1x16xf32> to vector<16x16xf32>
    %515 = arith.addf %512, %514 : vector<16x16xf32>
    %c0_149 = arith.constant 0 : index
    %c0_150 = arith.constant 0 : index
    %516 = vector.load %arg15[%c0_149, %c0_150] : memref<16x16xf32, #tpu.memory_space<vmem>>, vector<16x16xf32>
    tpu.vector_store %arg15[%c0_149, %c0_150], %515 {strides = array<i32>} : memref<16x16xf32, #tpu.memory_space<vmem>>, vector<16x16xf32>,
    return
  }
}

</mosaic_0001>

<llo_original>
// kernel: combined_model_forward.1
$region0: #{combined_model_forward.1}
  #allocation0 [shape = 'u32[]', space=smem, size = 0x4, offset = 0x4, fixed_abs, tag = 'smem constant byte address 0x4 - core index']
  #allocation1 [shape = 'u32[72,128]{1,0:T(1,128)}', space=vmem, size = 0x9000, scoped, tag = 'internal scratch']
  %s0 = inlined_call_operand.vmem [shape: f32[16,16], index: 0, kind: input, shape index: {}]
  %s1 = inlined_call_operand.vmem [shape: f32[16,160], index: 1, kind: input, shape index: {}]
  %s2 = inlined_call_operand.vmem [shape: f32[32,128], index: 2, kind: input, shape index: {}]
  %s3 = inlined_call_operand.hbm [shape: f32[1,128], index: 3, kind: input, shape index: {}]
  %s4 = inlined_call_operand.vmem [shape: f32[32,128], index: 4, kind: input, shape index: {}]
  %s5 = inlined_call_operand.vmem [shape: f32[32,128], index: 5, kind: input, shape index: {}]
  %s6 = inlined_call_operand.vmem [shape: f32[1,128], index: 6, kind: input, shape index: {}]
  %s7 = inlined_call_operand.vmem [shape: f32[32,16], index: 7, kind: input, shape index: {}]
  %s8 = inlined_call_operand.vmem [shape: f32[1,16], index: 8, kind: input, shape index: {}]
  %s9 = inlined_call_operand.vmem [shape: f32[1,32], index: 9, kind: input, shape index: {}]
  %s10 = inlined_call_operand.vmem [shape: f32[32,16], index: 10, kind: input, shape index: {}]
  %s11 = inlined_call_operand.vmem [shape: f32[1,16], index: 11, kind: input, shape index: {}]
  %s12 = inlined_call_operand.vmem [shape: f32[16,16], index: 12, kind: input, shape index: {}]
  %s13 = inlined_call_operand.vmem [shape: f32[16,16], index: 13, kind: input, shape index: {}]
  %s14 = inlined_call_operand.hbm [shape: f32[1,16], index: 14, kind: input, shape index: {}]
  %s15 = inlined_call_operand.vmem [shape: f32[16,16], index: 15, kind: output, shape index: {}]
  %s16 = sld [smem:[#allocation0]]
  $region78: #{combined_model_forward.1} parent=0
    _
  %s18 = ssub.s32 1, %s16
  %s19 = scalar_select 0, %s18, %s16
  $region1: #{combined_model_forward.1} parent=0
    #allocation2 [shape = 'u8[512]{0}', space=vmem, size = 0x400, scoped, tag = 'input window, operand 3, single buffered']
    #allocation3 [shape = 's32[1]{0}', space=sflag, size = 0x4, scoped, tag = 'scoped memory for combined_model_forward.1']
    #allocation4 [shape = 'u8[512]{0}', space=vmem, size = 0x400, scoped, tag = 'input window, operand 14, single buffered']
    #allocation5 [shape = 's32[1]{0}', space=sflag, size = 0x4, scoped, tag = 'scoped memory for combined_model_forward.1']
    %20 = vsyncpa [#allocation3], 0
    %21 = vsyncpa [#allocation5], 0
    // Predicated region
    $region2: #{combined_model_forward.1} parent=1 // pred_check
      _
    $region3: #{combined_model_forward.1} parent=1 // pred_check_branch
      %23 = sbr.rel (0) target = $region5
    $region4: #{combined_model_forward.1} parent=1 // pred_region
      _
    $region5: #{combined_model_forward.1} parent=1 // pred_fallthru
      _
    // Predicated region
    $region6: #{combined_model_forward.1} parent=1 // pred_check
      _
    $region7: #{combined_model_forward.1} parent=1 // pred_check_branch
      %25 = sbr.rel (0) target = $region9
    $region8: #{combined_model_forward.1} parent=1 // pred_region
      _
    $region9: #{combined_model_forward.1} parent=1 // pred_fallthru
      _
    // Predicated region
    $region10: #{combined_model_forward.1} parent=1 // pred_check
      _
    $region11: #{combined_model_forward.1} parent=1 // pred_check_branch
      %27 = sbr.rel (0) target = $region13
    $region12: #{combined_model_forward.1} parent=1 // pred_region
      _
    $region13: #{combined_model_forward.1} parent=1 // pred_fallthru
      _
    // Predicated region
    $region14: #{combined_model_forward.1} parent=1 // pred_check
      _
    $region15: #{combined_model_forward.1} parent=1 // pred_check_branch
      %29 = sbr.rel (0) target = $region17
    $region16: #{combined_model_forward.1} parent=1 // pred_region
      %31 = vsyncadd [#allocation3], 0
      %s33 = sshll.u32 %s3, 4
      %s34 = int_to_ptr.hbm [resolvable:$true] %s33
      %s35 = sshll.u32 [#allocation2], 4
      %s36 = int_to_ptr.vmem [resolvable:$true] %s35
      %38 = dma.hbm_to_vmem [thread:$0]  %s34, 16, %s36, [#allocation3]
    $region17: #{combined_model_forward.1} parent=1 // pred_fallthru
      _
    // Predicated region
    $region18: #{combined_model_forward.1} parent=1 // pred_check
      _
    $region19: #{combined_model_forward.1} parent=1 // pred_check_branch
      %40 = sbr.rel (0) target = $region21
    $region20: #{combined_model_forward.1} parent=1 // pred_region
      _
    $region21: #{combined_model_forward.1} parent=1 // pred_fallthru
      _
    // Predicated region
    $region22: #{combined_model_forward.1} parent=1 // pred_check
      _
    $region23: #{combined_model_forward.1} parent=1 // pred_check_branch
      %42 = sbr.rel (0) target = $region25
    $region24: #{combined_model_forward.1} parent=1 // pred_region
      _
    $region25: #{combined_model_forward.1} parent=1 // pred_fallthru
      _
    // Predicated region
    $region26: #{combined_model_forward.1} parent=1 // pred_check
      _
    $region27: #{combined_model_forward.1} parent=1 // pred_check_branch
      %44 = sbr.rel (0) target = $region29
    $region28: #{combined_model_forward.1} parent=1 // pred_region
      _
    $region29: #{combined_model_forward.1} parent=1 // pred_fallthru
      _
    // Predicated region
    $region30: #{combined_model_forward.1} parent=1 // pred_check
      _
    $region31: #{combined_model_forward.1} parent=1 // pred_check_branch
      %46 = sbr.rel (0) target = $region33
    $region32: #{combined_model_forward.1} parent=1 // pred_region
      _
    $region33: #{combined_model_forward.1} parent=1 // pred_fallthru
      _
    // Predicated region
    $region34: #{combined_model_forward.1} parent=1 // pred_check
      _
    $region35: #{combined_model_forward.1} parent=1 // pred_check_branch
      %48 = sbr.rel (0) target = $region37
    $region36: #{combined_model_forward.1} parent=1 // pred_region
      _
    $region37: #{combined_model_forward.1} parent=1 // pred_fallthru
      _
    // Predicated region
    $region38: #{combined_model_forward.1} parent=1 // pred_check
      _
    $region39: #{combined_model_forward.1} parent=1 // pred_check_branch
      %50 = sbr.rel (0) target = $region41
    $region40: #{combined_model_forward.1} parent=1 // pred_region
      _
    $region41: #{combined_model_forward.1} parent=1 // pred_fallthru
      _
    // Predicated region
    $region42: #{combined_model_forward.1} parent=1 // pred_check
      _
    $region43: #{combined_model_forward.1} parent=1 // pred_check_branch
      %52 = sbr.rel (0) target = $region45
    $region44: #{combined_model_forward.1} parent=1 // pred_region
      _
    $region45: #{combined_model_forward.1} parent=1 // pred_fallthru
      _
    // Predicated region
    $region46: #{combined_model_forward.1} parent=1 // pred_check
      _
    $region47: #{combined_model_forward.1} parent=1 // pred_check_branch
      %54 = sbr.rel (0) target = $region49
    $region48: #{combined_model_forward.1} parent=1 // pred_region
      _
    $region49: #{combined_model_forward.1} parent=1 // pred_fallthru
      _
    // Predicated region
    $region50: #{combined_model_forward.1} parent=1 // pred_check
      _
    $region51: #{combined_model_forward.1} parent=1 // pred_check_branch
      %56 = sbr.rel (0) target = $region53
    $region52: #{combined_model_forward.1} parent=1 // pred_region
      _
    $region53: #{combined_model_forward.1} parent=1 // pred_fallthru
      _
    // Predicated region
    $region54: #{combined_model_forward.1} parent=1 // pred_check
      _
    $region55: #{combined_model_forward.1} parent=1 // pred_check_branch
      %58 = sbr.rel (0) target = $region57
    $region56: #{combined_model_forward.1} parent=1 // pred_region
      _
    $region57: #{combined_model_forward.1} parent=1 // pred_fallthru
      _
    // Predicated region
    $region58: #{combined_model_forward.1} parent=1 // pred_check
      _
    $region59: #{combined_model_forward.1} parent=1 // pred_check_branch
      %60 = sbr.rel (0) target = $region61
    $region60: #{combined_model_forward.1} parent=1 // pred_region
      %62 = vsyncadd [#allocation5], 0
      %s64 = sshll.u32 %s14, 4
      %s65 = int_to_ptr.hbm [resolvable:$true] %s64
      %s66 = sshll.u32 [#allocation4], 4
      %s67 = int_to_ptr.vmem [resolvable:$true] %s66
      %69 = dma.hbm_to_vmem [thread:$0]  %s65, 16, %s67, [#allocation5]
    $region61: #{combined_model_forward.1} parent=1 // pred_fallthru
      _
    // Predicated region
    $region62: #{combined_model_forward.1} parent=1 // pred_check
      _
    $region63: #{combined_model_forward.1} parent=1 // pred_check_branch
      %71 = sbr.rel (0) target = $region65
    $region64: #{combined_model_forward.1} parent=1 // pred_region
      %73 = dma.done [#allocation3], 16
    $region65: #{combined_model_forward.1} parent=1 // pred_fallthru
      _
    // Predicated region
    $region66: #{combined_model_forward.1} parent=1 // pred_check
      _
    $region67: #{combined_model_forward.1} parent=1 // pred_check_branch
      %75 = sbr.rel (0) target = $region69
    $region68: #{combined_model_forward.1} parent=1 // pred_region
      %77 = dma.done [#allocation5], 16
    $region69: #{combined_model_forward.1} parent=1 // pred_fallthru
      _
    %v78 = vld [vmem:[%s0] sm:$0xff]
    %v79 = vld [vmem:[%s0 + $0x8] sm:$0xff]
    %v80 = vld [vmem:[%s1] sm:$0xff]
    %v81 = vld [vmem:[%s1 + $0x8] sm:$0xff]
    %v82 = vld [vmem:[%s1 + $0x10] sm:$0xff]
    %v83 = vld [vmem:[%s1 + $0x18] sm:$0xff]
    %vm84 = vcmask 130048
    %v86 = vsel %vm84, %v78, 0
    %v89 = vsel %vm84, %v79, 0
    %91 = vmatpush.msra.mxu0 0.0
    %92 = vmatpush.msra.mxu0 0.0
    %93 = vmatpush.msra.mxu0 0.0
    %94 = vmatpush.msra.mxu0 0.0
    %95 = vmatpush.msra.mxu0 0.0
    %96 = vmatpush.msra.mxu0 0.0
    %97 = vmatpush.msra.mxu0 0.0
    %98 = vmatpush.msra.mxu0 0.0
    %99 = vmatpush.msra.mxu0 0.0
    %100 = vmatpush.msra.mxu0 0.0
    %101 = vmatpush.msra.mxu0 0.0
    %102 = vmatpush.msra.mxu0 0.0
    %103 = vmatpush.msra.mxu0 0.0
    %104 = vmatpush.msra.mxu0 0.0
    %105 = vmatpush.msra.mxu0 %v82
    %106 = vmatpush.msra.mxu0 %v80
    %107 = vmatmul.f32.gmra.mxu0 %v86
    %v108 = vpop.f32.mrf.mxu0
    %v109 = vadd.f32 0.0, %v108
    %110 = vmatmul.f32.gmra.mxu0 %v89
    %v111 = vpop.f32.mrf.mxu0
    %v112 = vadd.f32 0.0, %v111
    %113 = vdwg.mxu0
    %114 = vmatpush.msra.mxu0 0.0
    %115 = vmatpush.msra.mxu0 0.0
    %116 = vmatpush.msra.mxu0 0.0
    %117 = vmatpush.msra.mxu0 0.0
    %118 = vmatpush.msra.mxu0 0.0
    %119 = vmatpush.msra.mxu0 0.0
    %120 = vmatpush.msra.mxu0 0.0
    %121 = vmatpush.msra.mxu0 0.0
    %122 = vmatpush.msra.mxu0 0.0
    %123 = vmatpush.msra.mxu0 0.0
    %124 = vmatpush.msra.mxu0 0.0
    %125 = vmatpush.msra.mxu0 0.0
    %126 = vmatpush.msra.mxu0 0.0
    %127 = vmatpush.msra.mxu0 0.0
    %128 = vmatpush.msra.mxu0 %v83
    %129 = vmatpush.msra.mxu0 %v81
    %130 = vmatmul.f32.gmra.mxu0 %v86
    %v131 = vpop.f32.mrf.mxu0
    %v132 = vadd.f32 0.0, %v131
    %133 = vmatmul.f32.gmra.mxu0 %v89
    %v134 = vpop.f32.mrf.mxu0
    %v135 = vadd.f32 0.0, %v134
    %136 = vdwg.mxu0
    %v137 = vld [vmem:[#allocation2] sm:$0x1]
    %v139 = vperm.slane %v137, 0
    %v141 = vadd.f32 %v109, %v139
    %v142 = vadd.f32 %v112, %v139
    %v143 = vld [vmem:[%s9] sm:$0x1]
    %v145 = vperm.slane %v143, 0
    %v147 = vadd.f32 %v132, %v145
    %v148 = vadd.f32 %v135, %v145
    %v149 = vmax.f32 %v147, 0.0
    %v150 = vmax.f32 %v148, 0.0
    %v151 = vld [vmem:[%s10] sm:$0xff]
    %v152 = vld [vmem:[%s10 + $0x8] sm:$0xff]
    %v153 = vld [vmem:[%s10 + $0x10] sm:$0xff]
    %v154 = vld [vmem:[%s10 + $0x18] sm:$0xff]
    %v155 = vld [vmem:[%s11] sm:$0x1]
    %v157 = vperm.slane %v155, 0
    %vm159 = vcmask 261120
    %v161 = vsel %vm159, %v149, 0
    %v164 = vsel %vm159, %v150, 0
    %166 = vmatpush.msra.mxu0 0.0
    %167 = vmatpush.msra.mxu0 0.0
    %168 = vmatpush.msra.mxu0 0.0
    %169 = vmatpush.msra.mxu0 0.0
    %170 = vmatpush.msra.mxu0 0.0
    %171 = vmatpush.msra.mxu0 0.0
    %172 = vmatpush.msra.mxu0 0.0
    %173 = vmatpush.msra.mxu0 0.0
    %174 = vmatpush.msra.mxu0 0.0
    %175 = vmatpush.msra.mxu0 0.0
    %176 = vmatpush.msra.mxu0 0.0
    %177 = vmatpush.msra.mxu0 0.0
    %178 = vmatpush.msra.mxu0 %v154
    %179 = vmatpush.msra.mxu0 %v153
    %180 = vmatpush.msra.mxu0 %v152
    %181 = vmatpush.msra.mxu0 %v151
    %182 = vmatmul.f32.gmra.mxu0 %v161
    %v183 = vpop.f32.mrf.mxu0
    %v184 = vadd.f32 %v157, %v183
    %185 = vmatmul.f32.gmra.mxu0 %v164
    %v186 = vpop.f32.mrf.mxu0
    %v187 = vadd.f32 %v157, %v186
    %188 = vdwg.mxu0
    %v189 = vld [vmem:[%s6] sm:$0x1]
    %v191 = vperm.slane %v189, 0
    %v193 = vld [vmem:[%s2] sm:$0xff]
    %v194 = vld [vmem:[%s2 + $0x8] sm:$0xff]
    %v195 = vld [vmem:[%s2 + $0x10] sm:$0xff]
    %v196 = vld [vmem:[%s2 + $0x18] sm:$0xff]
    %v198 = vsel %vm159, 0.0, 0
    %200 = vmatpush.msra.mxu0 0.0
    %201 = vmatpush.msra.mxu0 0.0
    %202 = vmatpush.msra.mxu0 0.0
    %203 = vmatpush.msra.mxu0 0.0
    %204 = vmatpush.msra.mxu0 0.0
    %205 = vmatpush.msra.mxu0 0.0
    %206 = vmatpush.msra.mxu0 0.0
    %207 = vmatpush.msra.mxu0 0.0
    %208 = vmatpush.msra.mxu0 0.0
    %209 = vmatpush.msra.mxu0 0.0
    %210 = vmatpush.msra.mxu0 0.0
    %211 = vmatpush.msra.mxu0 0.0
    %212 = vmatpush.msra.mxu0 %v196
    %213 = vmatpush.msra.mxu0 %v195
    %214 = vmatpush.msra.mxu0 %v194
    %215 = vmatpush.msra.mxu0 %v193
    %216 = vmatmul.f32.gmra.mxu0 %v198
    %v217 = vpop.f32.mrf.mxu0
    %v218 = vadd.f32 0.0, %v217
    %219 = vdwg.mxu0
    %v220 = vadd.f32 %v141, %v218
    %v221 = vxor.u32 %v220, 2147483648
    %v222 = vmul.f32 %v221, 1.442695
    %v223 = vpow.pop %v222
    %v224 = vadd.f32 %v223, 1.0
    %v225 = vrcp.pop %v224
    %v226 = vmul.f32 %v224, %v225
    %v227 = vsub.f32 1.0, %v226
    %v228 = vmul.f32 %v225, %v227
    %v229 = vadd.f32 %v225, %v228
    %vm230 = vweird.f32 %v224
    %vm231 = vweird.f32 %v225
    %vm232 = vmor %vm230, %vm231
    %v233 = vsel %vm232, %v225, %v229
    %v234 = vand.u32 2147483647, %v224
    %vm235 = vcmp.eq.f32.partialorder %v234, 8.507059e+37
    %v236 = vand.u32 %v224, 2147483648
    %v237 = vor.u32 1.1754944e-38, %v236
    %v238 = vsel %vm235, %v237, %v233
    %v239 = vmul.f32 1.0, %v238
    %v240 = vtanh.pop %v220
    %v241 = vmul.f32 %v239, 0.0
    %243 = vrot.lane.b32.xlu0 %v240, 64
    %v244 = vpop.permute.xlu0 %243
    %v246 = vmul.f32 %v239, %v244
    %248 = vrot.lane.b32.xlu0 %v246, 32
    %v249 = vpop.permute.xlu0 %248
    %v251 = vadd.f32 %v241, %v249
    %v252 = vtanh.pop %v251
    %254 = vrot.lane.b32.xlu0 %v252, 64
    %v255 = vpop.permute.xlu0 %254
    %v257 = vmul.f32 %v239, %v255
    %v258 = vld [vmem:[%s4] sm:$0xff]
    %v259 = vld [vmem:[%s4 + $0x8] sm:$0xff]
    %v260 = vld [vmem:[%s4 + $0x10] sm:$0xff]
    %v261 = vld [vmem:[%s4 + $0x18] sm:$0xff]
    %v262 = vld [vmem:[%s5] sm:$0xff]
    %v263 = vld [vmem:[%s5 + $0x8] sm:$0xff]
    %v264 = vld [vmem:[%s5 + $0x10] sm:$0xff]
    %v265 = vld [vmem:[%s5 + $0x18] sm:$0xff]
    %266 = vmatpush.msra.mxu0 0.0
    %267 = vmatpush.msra.mxu0 0.0
    %268 = vmatpush.msra.mxu0 0.0
    %269 = vmatpush.msra.mxu0 0.0
    %270 = vmatpush.msra.mxu0 0.0
    %271 = vmatpush.msra.mxu0 0.0
    %272 = vmatpush.msra.mxu0 0.0
    %273 = vmatpush.msra.mxu0 0.0
    %274 = vmatpush.msra.mxu0 0.0
    %275 = vmatpush.msra.mxu0 0.0
    %276 = vmatpush.msra.mxu0 0.0
    %277 = vmatpush.msra.mxu0 0.0
    %278 = vmatpush.msra.mxu0 %v265
    %279 = vmatpush.msra.mxu0 %v264
    %280 = vmatpush.msra.mxu0 %v263
    %281 = vmatpush.msra.mxu0 %v262
    %282 = vmatmul.f32.gmra.mxu0 %v198
    %v283 = vpop.f32.mrf.mxu0
    %v284 = vadd.f32 0.0, %v283
    %285 = vdwg.mxu0
    %287 = vrot.lane.b32.xlu0 %v257, 32
    %v288 = vpop.permute.xlu0 %287
    %v289 = vsel %vm159, %v288, 0
    %291 = vmatpush.msra.mxu0 0.0
    %292 = vmatpush.msra.mxu0 0.0
    %293 = vmatpush.msra.mxu0 0.0
    %294 = vmatpush.msra.mxu0 0.0
    %295 = vmatpush.msra.mxu0 0.0
    %296 = vmatpush.msra.mxu0 0.0
    %297 = vmatpush.msra.mxu0 0.0
    %298 = vmatpush.msra.mxu0 0.0
    %299 = vmatpush.msra.mxu0 0.0
    %300 = vmatpush.msra.mxu0 0.0
    %301 = vmatpush.msra.mxu0 0.0
    %302 = vmatpush.msra.mxu0 0.0
    %303 = vmatpush.msra.mxu0 %v261
    %304 = vmatpush.msra.mxu0 %v260
    %305 = vmatpush.msra.mxu0 %v259
    %306 = vmatpush.msra.mxu0 %v258
    %307 = vmatmul.f32.gmra.mxu0 %v289
    %v308 = vpop.f32.mrf.mxu0
    %v309 = vadd.f32 %v284, %v308
    %310 = vdwg.mxu0
    %v311 = vadd.f32 %v309, %v191
    %v312 = vxor.u32 %v311, 2147483648
    %v313 = vmul.f32 %v312, 1.442695
    %v314 = vpow.pop %v313
    %v315 = vadd.f32 %v314, 1.0
    %v316 = vrcp.pop %v315
    %v317 = vmul.f32 %v315, %v316
    %v318 = vsub.f32 1.0, %v317
    %v319 = vmul.f32 %v316, %v318
    %v320 = vadd.f32 %v316, %v319
    %vm321 = vweird.f32 %v315
    %vm322 = vweird.f32 %v316
    %vm323 = vmor %vm321, %vm322
    %v324 = vsel %vm323, %v316, %v320
    %v325 = vand.u32 2147483647, %v315
    %vm326 = vcmp.eq.f32.partialorder %v325, 8.507059e+37
    %v327 = vand.u32 %v315, 2147483648
    %v328 = vor.u32 1.1754944e-38, %v327
    %v329 = vsel %vm326, %v328, %v324
    %v330 = vmul.f32 1.0, %v329
    %v331 = vtanh.pop %v311
    %v332 = vmul.f32 %v330, 0.0
    %334 = vrot.lane.b32.xlu0 %v331, 64
    %v335 = vpop.permute.xlu0 %334
    %v337 = vmul.f32 %v330, %v335
    %339 = vrot.lane.b32.xlu0 %v337, 32
    %v340 = vpop.permute.xlu0 %339
    %v342 = vadd.f32 %v332, %v340
    %v343 = vtanh.pop %v342
    %345 = vrot.lane.b32.xlu0 %v343, 64
    %v346 = vpop.permute.xlu0 %345
    %v348 = vmul.f32 %v330, %v346
    %349 = vmatpush.msra.mxu0 0.0
    %350 = vmatpush.msra.mxu0 0.0
    %351 = vmatpush.msra.mxu0 0.0
    %352 = vmatpush.msra.mxu0 0.0
    %353 = vmatpush.msra.mxu0 0.0
    %354 = vmatpush.msra.mxu0 0.0
    %355 = vmatpush.msra.mxu0 0.0
    %356 = vmatpush.msra.mxu0 0.0
    %357 = vmatpush.msra.mxu0 0.0
    %358 = vmatpush.msra.mxu0 0.0
    %359 = vmatpush.msra.mxu0 0.0
    %360 = vmatpush.msra.mxu0 0.0
    %361 = vmatpush.msra.mxu0 %v196
    %362 = vmatpush.msra.mxu0 %v195
    %363 = vmatpush.msra.mxu0 %v194
    %364 = vmatpush.msra.mxu0 %v193
    %365 = vmatmul.f32.gmra.mxu0 %v289
    %v366 = vpop.f32.mrf.mxu0
    %v367 = vadd.f32 0.0, %v366
    %368 = vdwg.mxu0
    %v370 = vrot.slane %v367, 6
    %v372 = vadd.f32 %v141, %v370
    %v373 = vxor.u32 %v372, 2147483648
    %v374 = vmul.f32 %v373, 1.442695
    %v375 = vpow.pop %v374
    %v376 = vadd.f32 %v375, 1.0
    %v377 = vrcp.pop %v376
    %v378 = vmul.f32 %v376, %v377
    %v379 = vsub.f32 1.0, %v378
    %v380 = vmul.f32 %v377, %v379
    %v381 = vadd.f32 %v377, %v380
    %vm382 = vweird.f32 %v376
    %vm383 = vweird.f32 %v377
    %vm384 = vmor %vm382, %vm383
    %v385 = vsel %vm384, %v377, %v381
    %v386 = vand.u32 2147483647, %v376
    %vm387 = vcmp.eq.f32.partialorder %v386, 8.507059e+37
    %v388 = vand.u32 %v376, 2147483648
    %v389 = vor.u32 1.1754944e-38, %v388
    %v390 = vsel %vm387, %v389, %v385
    %v391 = vmul.f32 1.0, %v390
    %v392 = vtanh.pop %v372
    %v394 = vrot.slane %v251, 6
    %v396 = vmul.f32 %v391, %v394
    %398 = vrot.lane.b32.xlu0 %v392, 64
    %v399 = vpop.permute.xlu0 %398
    %v401 = vmul.f32 %v391, %v399
    %403 = vrot.lane.b32.xlu0 %v401, 32
    %v404 = vpop.permute.xlu0 %403
    %v406 = vadd.f32 %v396, %v404
    %v407 = vtanh.pop %v406
    %409 = vrot.lane.b32.xlu0 %v407, 64
    %v410 = vpop.permute.xlu0 %409
    %v412 = vmul.f32 %v391, %v410
    %414 = vrot.lane.b32.xlu0 %v348, 32
    %v415 = vpop.permute.xlu0 %414
    %v416 = vsel %vm159, %v415, 0
    %418 = vmatpush.msra.mxu0 0.0
    %419 = vmatpush.msra.mxu0 0.0
    %420 = vmatpush.msra.mxu0 0.0
    %421 = vmatpush.msra.mxu0 0.0
    %422 = vmatpush.msra.mxu0 0.0
    %423 = vmatpush.msra.mxu0 0.0
    %424 = vmatpush.msra.mxu0 0.0
    %425 = vmatpush.msra.mxu0 0.0
    %426 = vmatpush.msra.mxu0 0.0
    %427 = vmatpush.msra.mxu0 0.0
    %428 = vmatpush.msra.mxu0 0.0
    %429 = vmatpush.msra.mxu0 0.0
    %430 = vmatpush.msra.mxu0 %v265
    %431 = vmatpush.msra.mxu0 %v264
    %432 = vmatpush.msra.mxu0 %v263
    %433 = vmatpush.msra.mxu0 %v262
    %434 = vmatmul.f32.gmra.mxu0 %v416
    %v435 = vpop.f32.mrf.mxu0
    %v436 = vadd.f32 0.0, %v435
    %437 = vdwg.mxu0
    %v439 = vrot.slane %v412, 2
    %440 = vrot.lane.b32.xlu0 %v439, 32
    %v441 = vpop.permute.xlu0 %440
    %v442 = vsel %vm159, %v441, 0
    %444 = vmatpush.msra.mxu0 0.0
    %445 = vmatpush.msra.mxu0 0.0
    %446 = vmatpush.msra.mxu0 0.0
    %447 = vmatpush.msra.mxu0 0.0
    %448 = vmatpush.msra.mxu0 0.0
    %449 = vmatpush.msra.mxu0 0.0
    %450 = vmatpush.msra.mxu0 0.0
    %451 = vmatpush.msra.mxu0 0.0
    %452 = vmatpush.msra.mxu0 0.0
    %453 = vmatpush.msra.mxu0 0.0
    %454 = vmatpush.msra.mxu0 0.0
    %455 = vmatpush.msra.mxu0 0.0
    %456 = vmatpush.msra.mxu0 %v261
    %457 = vmatpush.msra.mxu0 %v260
    %458 = vmatpush.msra.mxu0 %v259
    %459 = vmatpush.msra.mxu0 %v258
    %460 = vmatmul.f32.gmra.mxu0 %v442
    %v461 = vpop.f32.mrf.mxu0
    %v462 = vadd.f32 %v436, %v461
    %463 = vdwg.mxu0
    %v464 = vadd.f32 %v462, %v191
    %v465 = vxor.u32 %v464, 2147483648
    %v466 = vmul.f32 %v465, 1.442695
    %v467 = vpow.pop %v466
    %v468 = vadd.f32 %v467, 1.0
    %v469 = vrcp.pop %v468
    %v470 = vmul.f32 %v468, %v469
    %v471 = vsub.f32 1.0, %v470
    %v472 = vmul.f32 %v469, %v471
    %v473 = vadd.f32 %v469, %v472
    %vm474 = vweird.f32 %v468
    %vm475 = vweird.f32 %v469
    %vm476 = vmor %vm474, %vm475
    %v477 = vsel %vm476, %v469, %v473
    %v478 = vand.u32 2147483647, %v468
    %vm479 = vcmp.eq.f32.partialorder %v478, 8.507059e+37
    %v480 = vand.u32 %v468, 2147483648
    %v481 = vor.u32 1.1754944e-38, %v480
    %v482 = vsel %vm479, %v481, %v477
    %v483 = vmul.f32 1.0, %v482
    %v484 = vtanh.pop %v464
    %v485 = vmul.f32 %v483, %v342
    %487 = vrot.lane.b32.xlu0 %v484, 64
    %v488 = vpop.permute.xlu0 %487
    %v490 = vmul.f32 %v483, %v488
    %492 = vrot.lane.b32.xlu0 %v490, 32
    %v493 = vpop.permute.xlu0 %492
    %v495 = vadd.f32 %v485, %v493
    %v496 = vtanh.pop %v495
    %498 = vrot.lane.b32.xlu0 %v496, 64
    %v499 = vpop.permute.xlu0 %498
    %v501 = vmul.f32 %v483, %v499
    %502 = vmatpush.msra.mxu0 0.0
    %503 = vmatpush.msra.mxu0 0.0
    %504 = vmatpush.msra.mxu0 0.0
    %505 = vmatpush.msra.mxu0 0.0
    %506 = vmatpush.msra.mxu0 0.0
    %507 = vmatpush.msra.mxu0 0.0
    %508 = vmatpush.msra.mxu0 0.0
    %509 = vmatpush.msra.mxu0 0.0
    %510 = vmatpush.msra.mxu0 0.0
    %511 = vmatpush.msra.mxu0 0.0
    %512 = vmatpush.msra.mxu0 0.0
    %513 = vmatpush.msra.mxu0 0.0
    %514 = vmatpush.msra.mxu0 %v196
    %515 = vmatpush.msra.mxu0 %v195
    %516 = vmatpush.msra.mxu0 %v194
    %517 = vmatpush.msra.mxu0 %v193
    %518 = vmatmul.f32.gmra.mxu0 %v442
    %v519 = vpop.f32.mrf.mxu0
    %v520 = vadd.f32 0.0, %v519
    %521 = vdwg.mxu0
    %v523 = vrot.slane %v520, 4
    %v525 = vadd.f32 %v141, %v523
    %v526 = vxor.u32 %v525, 2147483648
    %v527 = vmul.f32 %v526, 1.442695
    %v528 = vpow.pop %v527
    %v529 = vadd.f32 %v528, 1.0
    %v530 = vrcp.pop %v529
    %v531 = vmul.f32 %v529, %v530
    %v532 = vsub.f32 1.0, %v531
    %v533 = vmul.f32 %v530, %v532
    %v534 = vadd.f32 %v530, %v533
    %vm535 = vweird.f32 %v529
    %vm536 = vweird.f32 %v530
    %vm537 = vmor %vm535, %vm536
    %v538 = vsel %vm537, %v530, %v534
    %v539 = vand.u32 2147483647, %v529
    %vm540 = vcmp.eq.f32.partialorder %v539, 8.507059e+37
    %v541 = vand.u32 %v529, 2147483648
    %v542 = vor.u32 1.1754944e-38, %v541
    %v543 = vsel %vm540, %v542, %v538
    %v544 = vmul.f32 1.0, %v543
    %v545 = vtanh.pop %v525
    %v547 = vrot.slane %v406, 6
    %v549 = vmul.f32 %v544, %v547
    %551 = vrot.lane.b32.xlu0 %v545, 64
    %v552 = vpop.permute.xlu0 %551
    %v554 = vmul.f32 %v544, %v552
    %556 = vrot.lane.b32.xlu0 %v554, 32
    %v557 = vpop.permute.xlu0 %556
    %v559 = vadd.f32 %v549, %v557
    %v560 = vtanh.pop %v559
    %562 = vrot.lane.b32.xlu0 %v560, 64
    %v563 = vpop.permute.xlu0 %562
    %v565 = vmul.f32 %v544, %v563
    %567 = vrot.lane.b32.xlu0 %v501, 32
    %v568 = vpop.permute.xlu0 %567
    %v569 = vsel %vm159, %v568, 0
    %571 = vmatpush.msra.mxu0 0.0
    %572 = vmatpush.msra.mxu0 0.0
    %573 = vmatpush.msra.mxu0 0.0
    %574 = vmatpush.msra.mxu0 0.0
    %575 = vmatpush.msra.mxu0 0.0
    %576 = vmatpush.msra.mxu0 0.0
    %577 = vmatpush.msra.mxu0 0.0
    %578 = vmatpush.msra.mxu0 0.0
    %579 = vmatpush.msra.mxu0 0.0
    %580 = vmatpush.msra.mxu0 0.0
    %581 = vmatpush.msra.mxu0 0.0
    %582 = vmatpush.msra.mxu0 0.0
    %583 = vmatpush.msra.mxu0 %v265
    %584 = vmatpush.msra.mxu0 %v264
    %585 = vmatpush.msra.mxu0 %v263
    %586 = vmatpush.msra.mxu0 %v262
    %587 = vmatmul.f32.gmra.mxu0 %v569
    %v588 = vpop.f32.mrf.mxu0
    %v589 = vadd.f32 0.0, %v588
    %590 = vdwg.mxu0
    %v592 = vrot.slane %v565, 4
    %593 = vrot.lane.b32.xlu0 %v592, 32
    %v594 = vpop.permute.xlu0 %593
    %v595 = vsel %vm159, %v594, 0
    %597 = vmatpush.msra.mxu0 0.0
    %598 = vmatpush.msra.mxu0 0.0
    %599 = vmatpush.msra.mxu0 0.0
    %600 = vmatpush.msra.mxu0 0.0
    %601 = vmatpush.msra.mxu0 0.0
    %602 = vmatpush.msra.mxu0 0.0
    %603 = vmatpush.msra.mxu0 0.0
    %604 = vmatpush.msra.mxu0 0.0
    %605 = vmatpush.msra.mxu0 0.0
    %606 = vmatpush.msra.mxu0 0.0
    %607 = vmatpush.msra.mxu0 0.0
    %608 = vmatpush.msra.mxu0 0.0
    %609 = vmatpush.msra.mxu0 %v261
    %610 = vmatpush.msra.mxu0 %v260
    %611 = vmatpush.msra.mxu0 %v259
    %612 = vmatpush.msra.mxu0 %v258
    %613 = vmatmul.f32.gmra.mxu0 %v595
    %v614 = vpop.f32.mrf.mxu0
    %v615 = vadd.f32 %v589, %v614
    %616 = vdwg.mxu0
    %v617 = vadd.f32 %v615, %v191
    %v618 = vxor.u32 %v617, 2147483648
    %v619 = vmul.f32 %v618, 1.442695
    %v620 = vpow.pop %v619
    %v621 = vadd.f32 %v620, 1.0
    %v622 = vrcp.pop %v621
    %v623 = vmul.f32 %v621, %v622
    %v624 = vsub.f32 1.0, %v623
    %v625 = vmul.f32 %v622, %v624
    %v626 = vadd.f32 %v622, %v625
    %vm627 = vweird.f32 %v621
    %vm628 = vweird.f32 %v622
    %vm629 = vmor %vm627, %vm628
    %v630 = vsel %vm629, %v622, %v626
    %v631 = vand.u32 2147483647, %v621
    %vm632 = vcmp.eq.f32.partialorder %v631, 8.507059e+37
    %v633 = vand.u32 %v621, 2147483648
    %v634 = vor.u32 1.1754944e-38, %v633
    %v635 = vsel %vm632, %v634, %v630
    %v636 = vmul.f32 1.0, %v635
    %v637 = vtanh.pop %v617
    %v638 = vmul.f32 %v636, %v495
    %640 = vrot.lane.b32.xlu0 %v637, 64
    %v641 = vpop.permute.xlu0 %640
    %v643 = vmul.f32 %v636, %v641
    %645 = vrot.lane.b32.xlu0 %v643, 32
    %v646 = vpop.permute.xlu0 %645
    %v648 = vadd.f32 %v638, %v646
    %v649 = vtanh.pop %v648
    %651 = vrot.lane.b32.xlu0 %v649, 64
    %v652 = vpop.permute.xlu0 %651
    %v654 = vmul.f32 %v636, %v652
    %655 = vmatpush.msra.mxu0 0.0
    %656 = vmatpush.msra.mxu0 0.0
    %657 = vmatpush.msra.mxu0 0.0
    %658 = vmatpush.msra.mxu0 0.0
    %659 = vmatpush.msra.mxu0 0.0
    %660 = vmatpush.msra.mxu0 0.0
    %661 = vmatpush.msra.mxu0 0.0
    %662 = vmatpush.msra.mxu0 0.0
    %663 = vmatpush.msra.mxu0 0.0
    %664 = vmatpush.msra.mxu0 0.0
    %665 = vmatpush.msra.mxu0 0.0
    %666 = vmatpush.msra.mxu0 0.0
    %667 = vmatpush.msra.mxu0 %v196
    %668 = vmatpush.msra.mxu0 %v195
    %669 = vmatpush.msra.mxu0 %v194
    %670 = vmatpush.msra.mxu0 %v193
    %671 = vmatmul.f32.gmra.mxu0 %v595
    %v672 = vpop.f32.mrf.mxu0
    %v673 = vadd.f32 0.0, %v672
    %674 = vdwg.mxu0
    %v676 = vrot.slane %v673, 2
    %v678 = vadd.f32 %v141, %v676
    %v679 = vxor.u32 %v678, 2147483648
    %v680 = vmul.f32 %v679, 1.442695
    %v681 = vpow.pop %v680
    %v682 = vadd.f32 %v681, 1.0
    %v683 = vrcp.pop %v682
    %v684 = vmul.f32 %v682, %v683
    %v685 = vsub.f32 1.0, %v684
    %v686 = vmul.f32 %v683, %v685
    %v687 = vadd.f32 %v683, %v686
    %vm688 = vweird.f32 %v682
    %vm689 = vweird.f32 %v683
    %vm690 = vmor %vm688, %vm689
    %v691 = vsel %vm690, %v683, %v687
    %v692 = vand.u32 2147483647, %v682
    %vm693 = vcmp.eq.f32.partialorder %v692, 8.507059e+37
    %v694 = vand.u32 %v682, 2147483648
    %v695 = vor.u32 1.1754944e-38, %v694
    %v696 = vsel %vm693, %v695, %v691
    %v697 = vmul.f32 1.0, %v696
    %v698 = vtanh.pop %v678
    %v700 = vrot.slane %v559, 6
    %v702 = vmul.f32 %v697, %v700
    %704 = vrot.lane.b32.xlu0 %v698, 64
    %v705 = vpop.permute.xlu0 %704
    %v707 = vmul.f32 %v697, %v705
    %709 = vrot.lane.b32.xlu0 %v707, 32
    %v710 = vpop.permute.xlu0 %709
    %v712 = vadd.f32 %v702, %v710
    %v713 = vtanh.pop %v712
    %715 = vrot.lane.b32.xlu0 %v713, 64
    %v716 = vpop.permute.xlu0 %715
    %v718 = vmul.f32 %v697, %v716
    %720 = vrot.lane.b32.xlu0 %v654, 32
    %v721 = vpop.permute.xlu0 %720
    %v722 = vsel %vm159, %v721, 0
    %724 = vmatpush.msra.mxu0 0.0
    %725 = vmatpush.msra.mxu0 0.0
    %726 = vmatpush.msra.mxu0 0.0
    %727 = vmatpush.msra.mxu0 0.0
    %728 = vmatpush.msra.mxu0 0.0
    %729 = vmatpush.msra.mxu0 0.0
    %730 = vmatpush.msra.mxu0 0.0
    %731 = vmatpush.msra.mxu0 0.0
    %732 = vmatpush.msra.mxu0 0.0
    %733 = vmatpush.msra.mxu0 0.0
    %734 = vmatpush.msra.mxu0 0.0
    %735 = vmatpush.msra.mxu0 0.0
    %736 = vmatpush.msra.mxu0 %v265
    %737 = vmatpush.msra.mxu0 %v264
    %738 = vmatpush.msra.mxu0 %v263
    %739 = vmatpush.msra.mxu0 %v262
    %740 = vmatmul.f32.gmra.mxu0 %v722
    %v741 = vpop.f32.mrf.mxu0
    %v742 = vadd.f32 0.0, %v741
    %743 = vdwg.mxu0
    %v745 = vrot.slane %v718, 6
    %746 = vrot.lane.b32.xlu0 %v745, 32
    %v747 = vpop.permute.xlu0 %746
    %v748 = vsel %vm159, %v747, 0
    %750 = vmatpush.msra.mxu0 0.0
    %751 = vmatpush.msra.mxu0 0.0
    %752 = vmatpush.msra.mxu0 0.0
    %753 = vmatpush.msra.mxu0 0.0
    %754 = vmatpush.msra.mxu0 0.0
    %755 = vmatpush.msra.mxu0 0.0
    %756 = vmatpush.msra.mxu0 0.0
    %757 = vmatpush.msra.mxu0 0.0
    %758 = vmatpush.msra.mxu0 0.0
    %759 = vmatpush.msra.mxu0 0.0
    %760 = vmatpush.msra.mxu0 0.0
    %761 = vmatpush.msra.mxu0 0.0
    %762 = vmatpush.msra.mxu0 %v261
    %763 = vmatpush.msra.mxu0 %v260
    %764 = vmatpush.msra.mxu0 %v259
    %765 = vmatpush.msra.mxu0 %v258
    %766 = vmatmul.f32.gmra.mxu0 %v748
    %v767 = vpop.f32.mrf.mxu0
    %v768 = vadd.f32 %v742, %v767
    %769 = vdwg.mxu0
    %v770 = vadd.f32 %v768, %v191
    %v771 = vxor.u32 %v770, 2147483648
    %v772 = vmul.f32 %v771, 1.442695
    %v773 = vpow.pop %v772
    %v774 = vadd.f32 %v773, 1.0
    %v775 = vrcp.pop %v774
    %v776 = vmul.f32 %v774, %v775
    %v777 = vsub.f32 1.0, %v776
    %v778 = vmul.f32 %v775, %v777
    %v779 = vadd.f32 %v775, %v778
    %vm780 = vweird.f32 %v774
    %vm781 = vweird.f32 %v775
    %vm782 = vmor %vm780, %vm781
    %v783 = vsel %vm782, %v775, %v779
    %v784 = vand.u32 2147483647, %v774
    %vm785 = vcmp.eq.f32.partialorder %v784, 8.507059e+37
    %v786 = vand.u32 %v774, 2147483648
    %v787 = vor.u32 1.1754944e-38, %v786
    %v788 = vsel %vm785, %v787, %v783
    %v789 = vmul.f32 1.0, %v788
    %v790 = vtanh.pop %v770
    %v791 = vmul.f32 %v789, %v648
    %793 = vrot.lane.b32.xlu0 %v790, 64
    %v794 = vpop.permute.xlu0 %793
    %v796 = vmul.f32 %v789, %v794
    %798 = vrot.lane.b32.xlu0 %v796, 32
    %v799 = vpop.permute.xlu0 %798
    %v801 = vadd.f32 %v791, %v799
    %v802 = vtanh.pop %v801
    %804 = vrot.lane.b32.xlu0 %v802, 64
    %v805 = vpop.permute.xlu0 %804
    %v807 = vmul.f32 %v789, %v805
    %808 = vmatpush.msra.mxu0 0.0
    %809 = vmatpush.msra.mxu0 0.0
    %810 = vmatpush.msra.mxu0 0.0
    %811 = vmatpush.msra.mxu0 0.0
    %812 = vmatpush.msra.mxu0 0.0
    %813 = vmatpush.msra.mxu0 0.0
    %814 = vmatpush.msra.mxu0 0.0
    %815 = vmatpush.msra.mxu0 0.0
    %816 = vmatpush.msra.mxu0 0.0
    %817 = vmatpush.msra.mxu0 0.0
    %818 = vmatpush.msra.mxu0 0.0
    %819 = vmatpush.msra.mxu0 0.0
    %820 = vmatpush.msra.mxu0 %v196
    %821 = vmatpush.msra.mxu0 %v195
    %822 = vmatpush.msra.mxu0 %v194
    %823 = vmatpush.msra.mxu0 %v193
    %824 = vmatmul.f32.gmra.mxu0 %v748
    %v825 = vpop.f32.mrf.mxu0
    %v826 = vadd.f32 0.0, %v825
    %827 = vdwg.mxu0
    %v828 = vadd.f32 %v142, %v826
    %v829 = vxor.u32 %v828, 2147483648
    %v830 = vmul.f32 %v829, 1.442695
    %v831 = vpow.pop %v830
    %v832 = vadd.f32 %v831, 1.0
    %v833 = vrcp.pop %v832
    %v834 = vmul.f32 %v832, %v833
    %v835 = vsub.f32 1.0, %v834
    %v836 = vmul.f32 %v833, %v835
    %v837 = vadd.f32 %v833, %v836
    %vm838 = vweird.f32 %v832
    %vm839 = vweird.f32 %v833
    %vm840 = vmor %vm838, %vm839
    %v841 = vsel %vm840, %v833, %v837
    %v842 = vand.u32 2147483647, %v832
    %vm843 = vcmp.eq.f32.partialorder %v842, 8.507059e+37
    %v844 = vand.u32 %v832, 2147483648
    %v845 = vor.u32 1.1754944e-38, %v844
    %v846 = vsel %vm843, %v845, %v841
    %v847 = vmul.f32 1.0, %v846
    %v848 = vtanh.pop %v828
    %v850 = vrot.slane %v712, 6
    %v852 = vmul.f32 %v847, %v850
    %854 = vrot.lane.b32.xlu0 %v848, 64
    %v855 = vpop.permute.xlu0 %854
    %v857 = vmul.f32 %v847, %v855
    %859 = vrot.lane.b32.xlu0 %v857, 32
    %v860 = vpop.permute.xlu0 %859
    %v862 = vadd.f32 %v852, %v860
    %v863 = vtanh.pop %v862
    %865 = vrot.lane.b32.xlu0 %v863, 64
    %v866 = vpop.permute.xlu0 %865
    %v868 = vmul.f32 %v847, %v866
    %870 = vrot.lane.b32.xlu0 %v807, 32
    %v871 = vpop.permute.xlu0 %870
    %v872 = vsel %vm159, %v871, 0
    %874 = vmatpush.msra.mxu0 0.0
    %875 = vmatpush.msra.mxu0 0.0
    %876 = vmatpush.msra.mxu0 0.0
    %877 = vmatpush.msra.mxu0 0.0
    %878 = vmatpush.msra.mxu0 0.0
    %879 = vmatpush.msra.mxu0 0.0
    %880 = vmatpush.msra.mxu0 0.0
    %881 = vmatpush.msra.mxu0 0.0
    %882 = vmatpush.msra.mxu0 0.0
    %883 = vmatpush.msra.mxu0 0.0
    %884 = vmatpush.msra.mxu0 0.0
    %885 = vmatpush.msra.mxu0 0.0
    %886 = vmatpush.msra.mxu0 %v265
    %887 = vmatpush.msra.mxu0 %v264
    %888 = vmatpush.msra.mxu0 %v263
    %889 = vmatpush.msra.mxu0 %v262
    %890 = vmatmul.f32.gmra.mxu0 %v872
    %v891 = vpop.f32.mrf.mxu0
    %v892 = vadd.f32 0.0, %v891
    %893 = vdwg.mxu0
    %895 = vrot.lane.b32.xlu0 %v868, 32
    %v896 = vpop.permute.xlu0 %895
    %v897 = vsel %vm159, %v896, 0
    %899 = vmatpush.msra.mxu0 0.0
    %900 = vmatpush.msra.mxu0 0.0
    %901 = vmatpush.msra.mxu0 0.0
    %902 = vmatpush.msra.mxu0 0.0
    %903 = vmatpush.msra.mxu0 0.0
    %904 = vmatpush.msra.mxu0 0.0
    %905 = vmatpush.msra.mxu0 0.0
    %906 = vmatpush.msra.mxu0 0.0
    %907 = vmatpush.msra.mxu0 0.0
    %908 = vmatpush.msra.mxu0 0.0
    %909 = vmatpush.msra.mxu0 0.0
    %910 = vmatpush.msra.mxu0 0.0
    %911 = vmatpush.msra.mxu0 %v261
    %912 = vmatpush.msra.mxu0 %v260
    %913 = vmatpush.msra.mxu0 %v259
    %914 = vmatpush.msra.mxu0 %v258
    %915 = vmatmul.f32.gmra.mxu0 %v897
    %v916 = vpop.f32.mrf.mxu0
    %v917 = vadd.f32 %v892, %v916
    %918 = vdwg.mxu0
    %v919 = vadd.f32 %v917, %v191
    %v920 = vxor.u32 %v919, 2147483648
    %v921 = vmul.f32 %v920, 1.442695
    %v922 = vpow.pop %v921
    %v923 = vadd.f32 %v922, 1.0
    %v924 = vrcp.pop %v923
    %v925 = vmul.f32 %v923, %v924
    %v926 = vsub.f32 1.0, %v925
    %v927 = vmul.f32 %v924, %v926
    %v928 = vadd.f32 %v924, %v927
    %vm929 = vweird.f32 %v923
    %vm930 = vweird.f32 %v924
    %vm931 = vmor %vm929, %vm930
    %v932 = vsel %vm931, %v924, %v928
    %v933 = vand.u32 2147483647, %v923
    %vm934 = vcmp.eq.f32.partialorder %v933, 8.507059e+37
    %v935 = vand.u32 %v923, 2147483648
    %v936 = vor.u32 1.1754944e-38, %v935
    %v937 = vsel %vm934, %v936, %v932
    %v938 = vmul.f32 1.0, %v937
    %v939 = vtanh.pop %v919
    %v940 = vmul.f32 %v938, %v801
    %942 = vrot.lane.b32.xlu0 %v939, 64
    %v943 = vpop.permute.xlu0 %942
    %v945 = vmul.f32 %v938, %v943
    %947 = vrot.lane.b32.xlu0 %v945, 32
    %v948 = vpop.permute.xlu0 %947
    %v950 = vadd.f32 %v940, %v948
    %v951 = vtanh.pop %v950
    %953 = vrot.lane.b32.xlu0 %v951, 64
    %v954 = vpop.permute.xlu0 %953
    %v956 = vmul.f32 %v938, %v954
    %957 = vmatpush.msra.mxu0 0.0
    %958 = vmatpush.msra.mxu0 0.0
    %959 = vmatpush.msra.mxu0 0.0
    %960 = vmatpush.msra.mxu0 0.0
    %961 = vmatpush.msra.mxu0 0.0
    %962 = vmatpush.msra.mxu0 0.0
    %963 = vmatpush.msra.mxu0 0.0
    %964 = vmatpush.msra.mxu0 0.0
    %965 = vmatpush.msra.mxu0 0.0
    %966 = vmatpush.msra.mxu0 0.0
    %967 = vmatpush.msra.mxu0 0.0
    %968 = vmatpush.msra.mxu0 0.0
    %969 = vmatpush.msra.mxu0 %v196
    %970 = vmatpush.msra.mxu0 %v195
    %971 = vmatpush.msra.mxu0 %v194
    %972 = vmatpush.msra.mxu0 %v193
    %973 = vmatmul.f32.gmra.mxu0 %v897
    %v974 = vpop.f32.mrf.mxu0
    %v975 = vadd.f32 0.0, %v974
    %976 = vdwg.mxu0
    %v978 = vrot.slane %v975, 6
    %v980 = vadd.f32 %v142, %v978
    %v981 = vxor.u32 %v980, 2147483648
    %v982 = vmul.f32 %v981, 1.442695
    %v983 = vpow.pop %v982
    %v984 = vadd.f32 %v983, 1.0
    %v985 = vrcp.pop %v984
    %v986 = vmul.f32 %v984, %v985
    %v987 = vsub.f32 1.0, %v986
    %v988 = vmul.f32 %v985, %v987
    %v989 = vadd.f32 %v985, %v988
    %vm990 = vweird.f32 %v984
    %vm991 = vweird.f32 %v985
    %vm992 = vmor %vm990, %vm991
    %v993 = vsel %vm992, %v985, %v989
    %v994 = vand.u32 2147483647, %v984
    %vm995 = vcmp.eq.f32.partialorder %v994, 8.507059e+37
    %v996 = vand.u32 %v984, 2147483648
    %v997 = vor.u32 1.1754944e-38, %v996
    %v998 = vsel %vm995, %v997, %v993
    %v999 = vmul.f32 1.0, %v998
    %v1000 = vtanh.pop %v980
    %v1002 = vrot.slane %v862, 6
    %v1004 = vmul.f32 %v999, %v1002
    %1006 = vrot.lane.b32.xlu0 %v1000, 64
    %v1007 = vpop.permute.xlu0 %1006
    %v1009 = vmul.f32 %v999, %v1007
    %1011 = vrot.lane.b32.xlu0 %v1009, 32
    %v1012 = vpop.permute.xlu0 %1011
    %v1014 = vadd.f32 %v1004, %v1012
    %v1015 = vtanh.pop %v1014
    %1017 = vrot.lane.b32.xlu0 %v1015, 64
    %v1018 = vpop.permute.xlu0 %1017
    %v1020 = vmul.f32 %v999, %v1018
    %1022 = vrot.lane.b32.xlu0 %v956, 32
    %v1023 = vpop.permute.xlu0 %1022
    %v1024 = vsel %vm159, %v1023, 0
    %1026 = vmatpush.msra.mxu0 0.0
    %1027 = vmatpush.msra.mxu0 0.0
    %1028 = vmatpush.msra.mxu0 0.0
    %1029 = vmatpush.msra.mxu0 0.0
    %1030 = vmatpush.msra.mxu0 0.0
    %1031 = vmatpush.msra.mxu0 0.0
    %1032 = vmatpush.msra.mxu0 0.0
    %1033 = vmatpush.msra.mxu0 0.0
    %1034 = vmatpush.msra.mxu0 0.0
    %1035 = vmatpush.msra.mxu0 0.0
    %1036 = vmatpush.msra.mxu0 0.0
    %1037 = vmatpush.msra.mxu0 0.0
    %1038 = vmatpush.msra.mxu0 %v265
    %1039 = vmatpush.msra.mxu0 %v264
    %1040 = vmatpush.msra.mxu0 %v263
    %1041 = vmatpush.msra.mxu0 %v262
    %1042 = vmatmul.f32.gmra.mxu0 %v1024
    %v1043 = vpop.f32.mrf.mxu0
    %v1044 = vadd.f32 0.0, %v1043
    %1045 = vdwg.mxu0
    %v1047 = vrot.slane %v1020, 2
    %1048 = vrot.lane.b32.xlu0 %v1047, 32
    %v1049 = vpop.permute.xlu0 %1048
    %v1050 = vsel %vm159, %v1049, 0
    %1052 = vmatpush.msra.mxu0 0.0
    %1053 = vmatpush.msra.mxu0 0.0
    %1054 = vmatpush.msra.mxu0 0.0
    %1055 = vmatpush.msra.mxu0 0.0
    %1056 = vmatpush.msra.mxu0 0.0
    %1057 = vmatpush.msra.mxu0 0.0
    %1058 = vmatpush.msra.mxu0 0.0
    %1059 = vmatpush.msra.mxu0 0.0
    %1060 = vmatpush.msra.mxu0 0.0
    %1061 = vmatpush.msra.mxu0 0.0
    %1062 = vmatpush.msra.mxu0 0.0
    %1063 = vmatpush.msra.mxu0 0.0
    %1064 = vmatpush.msra.mxu0 %v261
    %1065 = vmatpush.msra.mxu0 %v260
    %1066 = vmatpush.msra.mxu0 %v259
    %1067 = vmatpush.msra.mxu0 %v258
    %1068 = vmatmul.f32.gmra.mxu0 %v1050
    %v1069 = vpop.f32.mrf.mxu0
    %v1070 = vadd.f32 %v1044, %v1069
    %1071 = vdwg.mxu0
    %v1072 = vadd.f32 %v1070, %v191
    %v1073 = vxor.u32 %v1072, 2147483648
    %v1074 = vmul.f32 %v1073, 1.442695
    %v1075 = vpow.pop %v1074
    %v1076 = vadd.f32 %v1075, 1.0
    %v1077 = vrcp.pop %v1076
    %v1078 = vmul.f32 %v1076, %v1077
    %v1079 = vsub.f32 1.0, %v1078
    %v1080 = vmul.f32 %v1077, %v1079
    %v1081 = vadd.f32 %v1077, %v1080
    %vm1082 = vweird.f32 %v1076
    %vm1083 = vweird.f32 %v1077
    %vm1084 = vmor %vm1082, %vm1083
    %v1085 = vsel %vm1084, %v1077, %v1081
    %v1086 = vand.u32 2147483647, %v1076
    %vm1087 = vcmp.eq.f32.partialorder %v1086, 8.507059e+37
    %v1088 = vand.u32 %v1076, 2147483648
    %v1089 = vor.u32 1.1754944e-38, %v1088
    %v1090 = vsel %vm1087, %v1089, %v1085
    %v1091 = vmul.f32 1.0, %v1090
    %v1092 = vtanh.pop %v1072
    %v1093 = vmul.f32 %v1091, %v950
    %1095 = vrot.lane.b32.xlu0 %v1092, 64
    %v1096 = vpop.permute.xlu0 %1095
    %v1098 = vmul.f32 %v1091, %v1096
    %1100 = vrot.lane.b32.xlu0 %v1098, 32
    %v1101 = vpop.permute.xlu0 %1100
    %v1103 = vadd.f32 %v1093, %v1101
    %v1104 = vtanh.pop %v1103
    %1106 = vrot.lane.b32.xlu0 %v1104, 64
    %v1107 = vpop.permute.xlu0 %1106
    %v1109 = vmul.f32 %v1091, %v1107
    %1110 = vmatpush.msra.mxu0 0.0
    %1111 = vmatpush.msra.mxu0 0.0
    %1112 = vmatpush.msra.mxu0 0.0
    %1113 = vmatpush.msra.mxu0 0.0
    %1114 = vmatpush.msra.mxu0 0.0
    %1115 = vmatpush.msra.mxu0 0.0
    %1116 = vmatpush.msra.mxu0 0.0
    %1117 = vmatpush.msra.mxu0 0.0
    %1118 = vmatpush.msra.mxu0 0.0
    %1119 = vmatpush.msra.mxu0 0.0
    %1120 = vmatpush.msra.mxu0 0.0
    %1121 = vmatpush.msra.mxu0 0.0
    %1122 = vmatpush.msra.mxu0 %v196
    %1123 = vmatpush.msra.mxu0 %v195
    %1124 = vmatpush.msra.mxu0 %v194
    %1125 = vmatpush.msra.mxu0 %v193
    %1126 = vmatmul.f32.gmra.mxu0 %v1050
    %v1127 = vpop.f32.mrf.mxu0
    %v1128 = vadd.f32 0.0, %v1127
    %1129 = vdwg.mxu0
    %v1131 = vrot.slane %v1128, 4
    %v1133 = vadd.f32 %v142, %v1131
    %v1134 = vxor.u32 %v1133, 2147483648
    %v1135 = vmul.f32 %v1134, 1.442695
    %v1136 = vpow.pop %v1135
    %v1137 = vadd.f32 %v1136, 1.0
    %v1138 = vrcp.pop %v1137
    %v1139 = vmul.f32 %v1137, %v1138
    %v1140 = vsub.f32 1.0, %v1139
    %v1141 = vmul.f32 %v1138, %v1140
    %v1142 = vadd.f32 %v1138, %v1141
    %vm1143 = vweird.f32 %v1137
    %vm1144 = vweird.f32 %v1138
    %vm1145 = vmor %vm1143, %vm1144
    %v1146 = vsel %vm1145, %v1138, %v1142
    %v1147 = vand.u32 2147483647, %v1137
    %vm1148 = vcmp.eq.f32.partialorder %v1147, 8.507059e+37
    %v1149 = vand.u32 %v1137, 2147483648
    %v1150 = vor.u32 1.1754944e-38, %v1149
    %v1151 = vsel %vm1148, %v1150, %v1146
    %v1152 = vmul.f32 1.0, %v1151
    %v1153 = vtanh.pop %v1133
    %v1155 = vrot.slane %v1014, 6
    %v1157 = vmul.f32 %v1152, %v1155
    %1159 = vrot.lane.b32.xlu0 %v1153, 64
    %v1160 = vpop.permute.xlu0 %1159
    %v1162 = vmul.f32 %v1152, %v1160
    %1164 = vrot.lane.b32.xlu0 %v1162, 32
    %v1165 = vpop.permute.xlu0 %1164
    %v1167 = vadd.f32 %v1157, %v1165
    %v1168 = vtanh.pop %v1167
    %1170 = vrot.lane.b32.xlu0 %v1168, 64
    %v1171 = vpop.permute.xlu0 %1170
    %v1173 = vmul.f32 %v1152, %v1171
    %1175 = vrot.lane.b32.xlu0 %v1109, 32
    %v1176 = vpop.permute.xlu0 %1175
    %v1177 = vsel %vm159, %v1176, 0
    %1179 = vmatpush.msra.mxu0 0.0
    %1180 = vmatpush.msra.mxu0 0.0
    %1181 = vmatpush.msra.mxu0 0.0
    %1182 = vmatpush.msra.mxu0 0.0
    %1183 = vmatpush.msra.mxu0 0.0
    %1184 = vmatpush.msra.mxu0 0.0
    %1185 = vmatpush.msra.mxu0 0.0
    %1186 = vmatpush.msra.mxu0 0.0
    %1187 = vmatpush.msra.mxu0 0.0
    %1188 = vmatpush.msra.mxu0 0.0
    %1189 = vmatpush.msra.mxu0 0.0
    %1190 = vmatpush.msra.mxu0 0.0
    %1191 = vmatpush.msra.mxu0 %v265
    %1192 = vmatpush.msra.mxu0 %v264
    %1193 = vmatpush.msra.mxu0 %v263
    %1194 = vmatpush.msra.mxu0 %v262
    %1195 = vmatmul.f32.gmra.mxu0 %v1177
    %v1196 = vpop.f32.mrf.mxu0
    %v1197 = vadd.f32 0.0, %v1196
    %1198 = vdwg.mxu0
    %v1200 = vrot.slane %v1173, 4
    %1201 = vrot.lane.b32.xlu0 %v1200, 32
    %v1202 = vpop.permute.xlu0 %1201
    %v1203 = vsel %vm159, %v1202, 0
    %1205 = vmatpush.msra.mxu0 0.0
    %1206 = vmatpush.msra.mxu0 0.0
    %1207 = vmatpush.msra.mxu0 0.0
    %1208 = vmatpush.msra.mxu0 0.0
    %1209 = vmatpush.msra.mxu0 0.0
    %1210 = vmatpush.msra.mxu0 0.0
    %1211 = vmatpush.msra.mxu0 0.0
    %1212 = vmatpush.msra.mxu0 0.0
    %1213 = vmatpush.msra.mxu0 0.0
    %1214 = vmatpush.msra.mxu0 0.0
    %1215 = vmatpush.msra.mxu0 0.0
    %1216 = vmatpush.msra.mxu0 0.0
    %1217 = vmatpush.msra.mxu0 %v261
    %1218 = vmatpush.msra.mxu0 %v260
    %1219 = vmatpush.msra.mxu0 %v259
    %1220 = vmatpush.msra.mxu0 %v258
    %1221 = vmatmul.f32.gmra.mxu0 %v1203
    %v1222 = vpop.f32.mrf.mxu0
    %v1223 = vadd.f32 %v1197, %v1222
    %1224 = vdwg.mxu0
    %v1225 = vadd.f32 %v1223, %v191
    %v1226 = vxor.u32 %v1225, 2147483648
    %v1227 = vmul.f32 %v1226, 1.442695
    %v1228 = vpow.pop %v1227
    %v1229 = vadd.f32 %v1228, 1.0
    %v1230 = vrcp.pop %v1229
    %v1231 = vmul.f32 %v1229, %v1230
    %v1232 = vsub.f32 1.0, %v1231
    %v1233 = vmul.f32 %v1230, %v1232
    %v1234 = vadd.f32 %v1230, %v1233
    %vm1235 = vweird.f32 %v1229
    %vm1236 = vweird.f32 %v1230
    %vm1237 = vmor %vm1235, %vm1236
    %v1238 = vsel %vm1237, %v1230, %v1234
    %v1239 = vand.u32 2147483647, %v1229
    %vm1240 = vcmp.eq.f32.partialorder %v1239, 8.507059e+37
    %v1241 = vand.u32 %v1229, 2147483648
    %v1242 = vor.u32 1.1754944e-38, %v1241
    %v1243 = vsel %vm1240, %v1242, %v1238
    %v1244 = vmul.f32 1.0, %v1243
    %v1245 = vtanh.pop %v1225
    %v1246 = vmul.f32 %v1244, %v1103
    %1248 = vrot.lane.b32.xlu0 %v1245, 64
    %v1249 = vpop.permute.xlu0 %1248
    %v1251 = vmul.f32 %v1244, %v1249
    %1253 = vrot.lane.b32.xlu0 %v1251, 32
    %v1254 = vpop.permute.xlu0 %1253
    %v1256 = vadd.f32 %v1246, %v1254
    %v1257 = vtanh.pop %v1256
    %1259 = vrot.lane.b32.xlu0 %v1257, 64
    %v1260 = vpop.permute.xlu0 %1259
    %v1262 = vmul.f32 %v1244, %v1260
    %1263 = vmatpush.msra.mxu0 0.0
    %1264 = vmatpush.msra.mxu0 0.0
    %1265 = vmatpush.msra.mxu0 0.0
    %1266 = vmatpush.msra.mxu0 0.0
    %1267 = vmatpush.msra.mxu0 0.0
    %1268 = vmatpush.msra.mxu0 0.0
    %1269 = vmatpush.msra.mxu0 0.0
    %1270 = vmatpush.msra.mxu0 0.0
    %1271 = vmatpush.msra.mxu0 0.0
    %1272 = vmatpush.msra.mxu0 0.0
    %1273 = vmatpush.msra.mxu0 0.0
    %1274 = vmatpush.msra.mxu0 0.0
    %1275 = vmatpush.msra.mxu0 %v196
    %1276 = vmatpush.msra.mxu0 %v195
    %1277 = vmatpush.msra.mxu0 %v194
    %1278 = vmatpush.msra.mxu0 %v193
    %1279 = vmatmul.f32.gmra.mxu0 %v1203
    %v1280 = vpop.f32.mrf.mxu0
    %v1281 = vadd.f32 0.0, %v1280
    %1282 = vdwg.mxu0
    %v1284 = vrot.slane %v1281, 2
    %v1286 = vadd.f32 %v142, %v1284
    %v1287 = vxor.u32 %v1286, 2147483648
    %v1288 = vmul.f32 %v1287, 1.442695
    %v1289 = vpow.pop %v1288
    %v1290 = vadd.f32 %v1289, 1.0
    %v1291 = vrcp.pop %v1290
    %v1292 = vmul.f32 %v1290, %v1291
    %v1293 = vsub.f32 1.0, %v1292
    %v1294 = vmul.f32 %v1291, %v1293
    %v1295 = vadd.f32 %v1291, %v1294
    %vm1296 = vweird.f32 %v1290
    %vm1297 = vweird.f32 %v1291
    %vm1298 = vmor %vm1296, %vm1297
    %v1299 = vsel %vm1298, %v1291, %v1295
    %v1300 = vand.u32 2147483647, %v1290
    %vm1301 = vcmp.eq.f32.partialorder %v1300, 8.507059e+37
    %v1302 = vand.u32 %v1290, 2147483648
    %v1303 = vor.u32 1.1754944e-38, %v1302
    %v1304 = vsel %vm1301, %v1303, %v1299
    %v1305 = vmul.f32 1.0, %v1304
    %v1306 = vtanh.pop %v1286
    %v1308 = vrot.slane %v1167, 6
    %v1310 = vmul.f32 %v1305, %v1308
    %1312 = vrot.lane.b32.xlu0 %v1306, 64
    %v1313 = vpop.permute.xlu0 %1312
    %v1315 = vmul.f32 %v1305, %v1313
    %1317 = vrot.lane.b32.xlu0 %v1315, 32
    %v1318 = vpop.permute.xlu0 %1317
    %v1320 = vadd.f32 %v1310, %v1318
    %v1321 = vtanh.pop %v1320
    %1323 = vrot.lane.b32.xlu0 %v1321, 64
    %v1324 = vpop.permute.xlu0 %1323
    %v1326 = vmul.f32 %v1305, %v1324
    %1328 = vrot.lane.b32.xlu0 %v1262, 32
    %v1329 = vpop.permute.xlu0 %1328
    %v1330 = vsel %vm159, %v1329, 0
    %1332 = vmatpush.msra.mxu0 0.0
    %1333 = vmatpush.msra.mxu0 0.0
    %1334 = vmatpush.msra.mxu0 0.0
    %1335 = vmatpush.msra.mxu0 0.0
    %1336 = vmatpush.msra.mxu0 0.0
    %1337 = vmatpush.msra.mxu0 0.0
    %1338 = vmatpush.msra.mxu0 0.0
    %1339 = vmatpush.msra.mxu0 0.0
    %1340 = vmatpush.msra.mxu0 0.0
    %1341 = vmatpush.msra.mxu0 0.0
    %1342 = vmatpush.msra.mxu0 0.0
    %1343 = vmatpush.msra.mxu0 0.0
    %1344 = vmatpush.msra.mxu0 %v265
    %1345 = vmatpush.msra.mxu0 %v264
    %1346 = vmatpush.msra.mxu0 %v263
    %1347 = vmatpush.msra.mxu0 %v262
    %1348 = vmatmul.f32.gmra.mxu0 %v1330
    %v1349 = vpop.f32.mrf.mxu0
    %v1350 = vadd.f32 0.0, %v1349
    %1351 = vdwg.mxu0
    %v1353 = vrot.slane %v1326, 6
    %1354 = vrot.lane.b32.xlu0 %v1353, 32
    %v1355 = vpop.permute.xlu0 %1354
    %v1356 = vsel %vm159, %v1355, 0
    %1358 = vmatpush.msra.mxu0 0.0
    %1359 = vmatpush.msra.mxu0 0.0
    %1360 = vmatpush.msra.mxu0 0.0
    %1361 = vmatpush.msra.mxu0 0.0
    %1362 = vmatpush.msra.mxu0 0.0
    %1363 = vmatpush.msra.mxu0 0.0
    %1364 = vmatpush.msra.mxu0 0.0
    %1365 = vmatpush.msra.mxu0 0.0
    %1366 = vmatpush.msra.mxu0 0.0
    %1367 = vmatpush.msra.mxu0 0.0
    %1368 = vmatpush.msra.mxu0 0.0
    %1369 = vmatpush.msra.mxu0 0.0
    %1370 = vmatpush.msra.mxu0 %v261
    %1371 = vmatpush.msra.mxu0 %v260
    %1372 = vmatpush.msra.mxu0 %v259
    %1373 = vmatpush.msra.mxu0 %v258
    %1374 = vmatmul.f32.gmra.mxu0 %v1356
    %v1375 = vpop.f32.mrf.mxu0
    %v1376 = vadd.f32 %v1350, %v1375
    %1377 = vdwg.mxu0
    %v1378 = vadd.f32 %v1376, %v191
    %v1379 = vxor.u32 %v1378, 2147483648
    %v1380 = vmul.f32 %v1379, 1.442695
    %v1381 = vpow.pop %v1380
    %v1382 = vadd.f32 %v1381, 1.0
    %v1383 = vrcp.pop %v1382
    %v1384 = vmul.f32 %v1382, %v1383
    %v1385 = vsub.f32 1.0, %v1384
    %v1386 = vmul.f32 %v1383, %v1385
    %v1387 = vadd.f32 %v1383, %v1386
    %vm1388 = vweird.f32 %v1382
    %vm1389 = vweird.f32 %v1383
    %vm1390 = vmor %vm1388, %vm1389
    %v1391 = vsel %vm1390, %v1383, %v1387
    %v1392 = vand.u32 2147483647, %v1382
    %vm1393 = vcmp.eq.f32.partialorder %v1392, 8.507059e+37
    %v1394 = vand.u32 %v1382, 2147483648
    %v1395 = vor.u32 1.1754944e-38, %v1394
    %v1396 = vsel %vm1393, %v1395, %v1391
    %v1397 = vmul.f32 1.0, %v1396
    %v1398 = vtanh.pop %v1378
    %v1399 = vmul.f32 %v1397, %v1256
    %1401 = vrot.lane.b32.xlu0 %v1398, 64
    %v1402 = vpop.permute.xlu0 %1401
    %v1404 = vmul.f32 %v1397, %v1402
    %1406 = vrot.lane.b32.xlu0 %v1404, 32
    %v1407 = vpop.permute.xlu0 %1406
    %v1409 = vadd.f32 %v1399, %v1407
    %v1410 = vtanh.pop %v1409
    %1412 = vrot.lane.b32.xlu0 %v1410, 64
    %v1413 = vpop.permute.xlu0 %1412
    %v1415 = vmul.f32 %v1397, %v1413
    %v1416 = vrot.slane %v501, 6
    %v1418 = vrot.slane %v654, 4
    %v1420 = vrot.slane %v807, 2
    %v1422 = vrot.slane %v1109, 6
    %v1424 = vrot.slane %v1262, 4
    %v1427 = vrot.slane %v1415, 2
    %vm1429 = vcmask 1041408
    %v1430 = vsel %vm1429, %v348, %v1416
    %vm1431 = vcmask 1043456
    %v1432 = vsel %vm1431, %v1430, %v1418
    %vm1433 = vcmask 1045504
    %v1434 = vsel %vm1433, %v1432, %v1420
    %v1435 = vsel %vm1429, %v956, %v1422
    %v1436 = vsel %vm1431, %v1435, %v1424
    %v1437 = vsel %vm1433, %v1436, %v1427
    %v1438 = vld [vmem:[%s7] sm:$0xff]
    %v1439 = vld [vmem:[%s7 + $0x8] sm:$0xff]
    %v1440 = vld [vmem:[%s7 + $0x10] sm:$0xff]
    %v1441 = vld [vmem:[%s7 + $0x18] sm:$0xff]
    %v1442 = vld [vmem:[%s8] sm:$0x1]
    %v1444 = vperm.slane %v1442, 0
    %1448 = vrot.lane.b32.xlu0 %v1434, 32
    %v1449 = vpop.permute.xlu0 %1448
    %1450 = vrot.lane.b32.xlu0 %v1437, 32
    %v1451 = vpop.permute.xlu0 %1450
    %v1452 = vsel %vm159, %v1449, 0
    %v1454 = vsel %vm159, %v1451, 0
    %1456 = vmatpush.msra.mxu0 0.0
    %1457 = vmatpush.msra.mxu0 0.0
    %1458 = vmatpush.msra.mxu0 0.0
    %1459 = vmatpush.msra.mxu0 0.0
    %1460 = vmatpush.msra.mxu0 0.0
    %1461 = vmatpush.msra.mxu0 0.0
    %1462 = vmatpush.msra.mxu0 0.0
    %1463 = vmatpush.msra.mxu0 0.0
    %1464 = vmatpush.msra.mxu0 0.0
    %1465 = vmatpush.msra.mxu0 0.0
    %1466 = vmatpush.msra.mxu0 0.0
    %1467 = vmatpush.msra.mxu0 0.0
    %1468 = vmatpush.msra.mxu0 %v1441
    %1469 = vmatpush.msra.mxu0 %v1440
    %1470 = vmatpush.msra.mxu0 %v1439
    %1471 = vmatpush.msra.mxu0 %v1438
    %1472 = vmatmul.f32.gmra.mxu0 %v1452
    %v1473 = vpop.f32.mrf.mxu0
    %v1474 = vadd.f32 %v1444, %v1473
    %1475 = vmatmul.f32.gmra.mxu0 %v1454
    %v1476 = vpop.f32.mrf.mxu0
    %v1477 = vadd.f32 %v1444, %v1476
    %1478 = vdwg.mxu0
    %v1479 = vld [vmem:[%s12] sm:$0xff]
    %v1480 = vld [vmem:[%s12 + $0x8] sm:$0xff]
    %v1481 = vld [vmem:[%s13] sm:$0xff]
    %v1482 = vld [vmem:[%s13 + $0x8] sm:$0xff]
    %v1484 = vsel %vm84, %v184, 0
    %v1487 = vsel %vm84, %v187, 0
    %1489 = vmatpush.msra.mxu0 0.0
    %1490 = vmatpush.msra.mxu0 0.0
    %1491 = vmatpush.msra.mxu0 0.0
    %1492 = vmatpush.msra.mxu0 0.0
    %1493 = vmatpush.msra.mxu0 0.0
    %1494 = vmatpush.msra.mxu0 0.0
    %1495 = vmatpush.msra.mxu0 0.0
    %1496 = vmatpush.msra.mxu0 0.0
    %1497 = vmatpush.msra.mxu0 0.0
    %1498 = vmatpush.msra.mxu0 0.0
    %1499 = vmatpush.msra.mxu0 0.0
    %1500 = vmatpush.msra.mxu0 0.0
    %1501 = vmatpush.msra.mxu0 0.0
    %1502 = vmatpush.msra.mxu0 0.0
    %1503 = vmatpush.msra.mxu0 %v1482
    %1504 = vmatpush.msra.mxu0 %v1481
    %1505 = vmatmul.f32.gmra.mxu0 %v1484
    %v1506 = vpop.f32.mrf.mxu0
    %v1507 = vadd.f32 0.0, %v1506
    %1508 = vmatmul.f32.gmra.mxu0 %v1487
    %v1509 = vpop.f32.mrf.mxu0
    %v1510 = vadd.f32 0.0, %v1509
    %1511 = vdwg.mxu0
    %v1513 = vsel %vm84, %v1474, 0
    %v1516 = vsel %vm84, %v1477, 0
    %1518 = vmatpush.msra.mxu0 0.0
    %1519 = vmatpush.msra.mxu0 0.0
    %1520 = vmatpush.msra.mxu0 0.0
    %1521 = vmatpush.msra.mxu0 0.0
    %1522 = vmatpush.msra.mxu0 0.0
    %1523 = vmatpush.msra.mxu0 0.0
    %1524 = vmatpush.msra.mxu0 0.0
    %1525 = vmatpush.msra.mxu0 0.0
    %1526 = vmatpush.msra.mxu0 0.0
    %1527 = vmatpush.msra.mxu0 0.0
    %1528 = vmatpush.msra.mxu0 0.0
    %1529 = vmatpush.msra.mxu0 0.0
    %1530 = vmatpush.msra.mxu0 0.0
    %1531 = vmatpush.msra.mxu0 0.0
    %1532 = vmatpush.msra.mxu0 %v1480
    %1533 = vmatpush.msra.mxu0 %v1479
    %1534 = vmatmul.f32.gmra.mxu0 %v1513
    %v1535 = vpop.f32.mrf.mxu0
    %v1536 = vadd.f32 %v1507, %v1535
    %1537 = vmatmul.f32.gmra.mxu0 %v1516
    %v1538 = vpop.f32.mrf.mxu0
    %v1539 = vadd.f32 %v1510, %v1538
    %1540 = vdwg.mxu0
    %v1541 = vld [vmem:[#allocation4] sm:$0x1]
    %v1543 = vperm.slane %v1541, 0
    %v1545 = vadd.f32 %v1536, %v1543
    %v1546 = vadd.f32 %v1539, %v1543
    %1547 = vst.msk [vmem:[%s15] sm:$0xff] %vm84, %v1545
    %1548 = vst.msk [vmem:[%s15 + $0x8] sm:$0xff] %vm84, %v1546
    // Predicated region
    $region70: #{combined_model_forward.1} parent=1 // pred_check
      _
    $region71: #{combined_model_forward.1} parent=1 // pred_check_branch
      %1550 = sbr.rel (0) target = $region73
    $region72: #{combined_model_forward.1} parent=1 // pred_region
      _
    $region73: #{combined_model_forward.1} parent=1 // pred_fallthru
      _
    // Predicated region
    $region74: #{combined_model_forward.1} parent=1 // pred_check
      _
    $region75: #{combined_model_forward.1} parent=1 // pred_check_branch
      %1552 = sbr.rel (0) target = $region77
    $region76: #{combined_model_forward.1} parent=1 // pred_region
      _
    $region77: #{combined_model_forward.1} parent=1 // pred_fallthru
      _
    %1553 = vsyncpa [#allocation3], 1
    %1554 = vsyncpa [#allocation5], 1

</llo_original>
